<compile_context>
chip_gen: v7x
topology: tpu7x:2x2x1
jax: 0.10.0
libtpu: 0.0.40
codegen_flags: <defaults>
</compile_context>

<pallas_src>
import functools

import jax
import jax.numpy as jnp
from jax.experimental import pallas as pl
from jax.experimental.pallas import tpu as pltpu


# ---------------------------------------------------------------------------
# Kernel
# ---------------------------------------------------------------------------
def _flash_attention_kernel(q_ref, k_ref, v_ref, o_ref, *scratch,
                            scale, kv_len, block_k, mask_kv,
                            acc_in_out, use_q_scratch, mxu_dtype=None):
    """One (head-block, q-block, kv-block) step of online-softmax attention.

    q_ref: (Gb, tq, D)   k_ref: (Gb, tk, D)   v_ref: (Gb, tk, Dv)
    o_ref: (Gb, tq, Dv)  -- doubles as the f32 accumulator when acc_in_out
    scratch: m (Gb,tq,1) f32, l (Gb,tq,1) f32,
             [acc (Gb,tq,Dv) f32 if not acc_in_out],
             [q_scaled (Gb,tq,D) q.dtype if use_q_scratch]
    """
    m_ref, l_ref = scratch[0], scratch[1]
    idx = 2
    if acc_in_out:
        acc_ref = o_ref
    else:
        acc_ref = scratch[idx]
        idx += 1
    qs_ref = scratch[idx] if use_q_scratch else None

    kv_idx = pl.program_id(2)

    @pl.when(kv_idx == 0)
    def _init():
        m_ref[...] = jnp.full(m_ref.shape, -jnp.inf, dtype=m_ref.dtype)
        l_ref[...] = jnp.zeros(l_ref.shape, dtype=l_ref.dtype)
        acc_ref[...] = jnp.zeros(acc_ref.shape, dtype=acc_ref.dtype)
        if qs_ref is not None:
            # hoist the 1/inv_scale_factor multiply out of the kv loop
            qs_ref[...] = q_ref[...] * jnp.asarray(scale, dtype=q_ref.dtype)

    q = qs_ref[...] if use_q_scratch else q_ref[...]
    k = k_ref[...]
    if mxu_dtype is not None:          # opt-in reduced-precision MXU operands
        q = q.astype(mxu_dtype)
        k = k.astype(mxu_dtype)

    # scores (Gb, tq, tk): contract on D, batch over Gb; no K transpose,
    # f32 accumulation on the MXU.
    s = jax.lax.dot_general(
        q, k,
        dimension_numbers=(((2,), (2,)), ((0,), (0,))),
        preferred_element_type=jnp.float32)

    if mask_kv:  # static flag: only emitted when Sk was padded
        col = kv_idx * block_k + jax.lax.broadcasted_iota(jnp.int32, s.shape, 2)
        s = jnp.where(col < kv_len, s, -jnp.inf)

    # online softmax update (all intermediates f32)
    m_prev = m_ref[...]
    m_new = jnp.maximum(m_prev, jnp.max(s, axis=-1, keepdims=True))
    alpha = jnp.exp(m_prev - m_new)
    p = jnp.exp(s - m_new)
    l_ref[...] = alpha * l_ref[...] + jnp.sum(p, axis=-1, keepdims=True)

    pv = jax.lax.dot_general(
        p.astype(v_ref.dtype), v_ref[...],
        dimension_numbers=(((2,), (1,)), ((0,), (0,))),
        preferred_element_type=jnp.float32)
    acc_ref[...] = alpha * acc_ref[...] + pv
    m_ref[...] = m_new

    @pl.when(kv_idx == pl.num_programs(2) - 1)
    def _finalize():
        inv_l = pl.reciprocal(l_ref[...], approx=False)  # exact: 1e-5 tolerance
        o_ref[...] = (acc_ref[...] * inv_l).astype(o_ref.dtype)


# ---------------------------------------------------------------------------
# Tiling / policy helpers
# ---------------------------------------------------------------------------
def _round_up(x, m):
    return ((x + m - 1) // m) * m


def _largest_divisor_leq(n, target, multiple=1):
    for d in range(min(target, n), 0, -1):
        if n % d == 0 and d % multiple == 0:
            return d
    return None


def _sublane_multiple(dtype):
    # f32 -> 8, bf16 -> 16, int8/fp8 -> 32 (packed sublane layouts)
    itemsize = jnp.dtype(dtype).itemsize
    return max(8, 32 // max(itemsize, 1))


def _pick_seq_block(size, target, mult):
    """Return (block, padded_size) for a sequence axis."""
    if size <= target:
        return size, size                       # one full-axis block (always legal)
    d = _largest_divisor_leq(size, target, mult)
    if d is not None and 2 * d > target:
        return d, size                          # clean divisor near target: no pad
    # padding path: split into ceil(size/target) roughly equal blocks
    n_blocks = -(-size // target)
    block = _round_up(-(-size // n_blocks), mult)
    padded = _round_up(size, block)
    return block, padded


def _tpu_policy():
    """Per-generation tile targets / VMEM budget."""
    kind = ""
    try:
        kind = jax.devices()[0].device_kind.lower()
    except Exception:
        pass
    if "v7" in kind:
        # 64 MiB VMEM, 2 TensorCores per chip
        return dict(q_target=256, k_target=512, head_cap=8,
                    vmem_limit=44 * 1024 * 1024, kv_buffers=2, two_tc=True)
    if "v6" in kind:
        return dict(q_target=256, k_target=1024, head_cap=8,
                    vmem_limit=96 * 1024 * 1024, kv_buffers=2, two_tc=False)
    if "v5" in kind and ("lite" in kind or "v5e" in kind):
        # lowest HBM BW: keep tq=128 (MXU friendly), deeper K/V buffering
        return dict(q_target=128, k_target=1024, head_cap=8,
                    vmem_limit=96 * 1024 * 1024, kv_buffers=3, two_tc=False)
    # unknown / older generation: conservative budget
    return dict(q_target=128, k_target=512, head_cap=8,
                vmem_limit=40 * 1024 * 1024, kv_buffers=2, two_tc=False)


def _ensure_two_parallel_blocks(G, Gb, Sq_p, tq, mult):
    """v7x: make the product of the two 'parallel' grid axes >= 2."""
    if (G // Gb) * (Sq_p // tq) >= 2:
        return Gb, Sq_p, tq
    if Gb > 1:
        for d in range(Gb - 1, 0, -1):
            if G % d == 0:
                return d, Sq_p, tq
    if tq > mult:
        new_tq = _round_up((tq + 1) // 2, mult)
        if new_tq < tq:
            return Gb, _round_up(Sq_p, new_tq), new_tq
    return Gb, Sq_p, tq


def _shrink_tk_for_vmem(Gb, tq, tk, D, Dv, q_bytes, kv_bytes, out_bytes,
                        kv_buffers, use_qs, acc_in_out, mult, vmem_limit):
    """Keep the working set comfortably within the per-generation VMEM budget."""
    budget = int(vmem_limit * 0.7)
    while True:
        est = 2 * Gb * tq * D * q_bytes                       # q (double-buffered)
        est += kv_buffers * Gb * tk * (D + Dv) * kv_bytes     # k, v blocks
        est += 2 * Gb * tq * Dv * out_bytes                   # out (double-buffered)
        est += 2 * Gb * tq * 4                                # m, l scratch
        est += 0 if acc_in_out else Gb * tq * Dv * 4          # acc scratch
        est += Gb * tq * D * q_bytes if use_qs else 0         # scaled-q scratch
        est += 2 * Gb * tq * tk * 4                           # f32 s and p tiles
        if est <= budget or tk <= mult:
            return tk
        tk = max(mult, (tk // 2 // mult) * mult)


def _kv_block_spec(shape, index_map, buffer_count):
    if buffer_count and buffer_count > 2:
        try:
            return pl.BlockSpec(shape, index_map,
                                pipeline_mode=pl.Buffered(buffer_count))
        except Exception:   # older jax without pipeline_mode / Buffered
            pass
    return pl.BlockSpec(shape, index_map)


# ---------------------------------------------------------------------------
# Wrapper (matches Model.forward semantics; f32 softmax, f32 output default)
# ---------------------------------------------------------------------------
def sdpa_pallas(query, key, value, dropout_p=0.0, inv_scale_factor=1.0, *,
                out_dtype=jnp.float32, mxu_dtype=None,
                q_block_target=None, k_block_target=None,
                head_block_target=None):
    assert dropout_p == 0.0, "only dropout_p=0.0 supported"
    # TODO(synk): dropout_p > 0 not implemented (module default 0.0 -> identity)

    B, H, Sq, D = query.shape
    _, _, Sk, Dk = key.shape
    _, _, Sv, Dv = value.shape
    assert D == Dk and Sk == Sv

    G = B * H
    q = query.reshape(G, Sq, D)
    k = key.reshape(G, Sk, D)
    v = value.reshape(G, Sk, Dv)

    pol = _tpu_policy()
    q_target = q_block_target if q_block_target is not None else pol["q_target"]
    k_target = k_block_target if k_block_target is not None else pol["k_target"]
    if head_block_target is not None:
        head_target = head_block_target
    else:
        # prefer a larger tq over head batching for long queries
        head_target = 1 if Sq >= 256 else (2 if Sq >= 128 else pol["head_cap"])

    mult_q = _sublane_multiple(q.dtype)
    mult_kv = max(_sublane_multiple(k.dtype), _sublane_multiple(v.dtype))

    tq, Sq_p = _pick_seq_block(Sq, q_target, mult_q)
    tk, Sk_p = _pick_seq_block(Sk, k_target, mult_kv)
    Gb = _largest_divisor_leq(G, max(1, head_target)) or 1

    if pol["two_tc"]:
        Gb, Sq_p, tq = _ensure_two_parallel_blocks(G, Gb, Sq_p, tq, mult_q)

    scale = 1.0 / float(inv_scale_factor)
    use_qs = (scale != 1.0)
    acc_in_out = (jnp.dtype(out_dtype) == jnp.dtype(jnp.float32))

    kv_bytes = max(jnp.dtype(k.dtype).itemsize, jnp.dtype(v.dtype).itemsize)
    new_tk = _shrink_tk_for_vmem(
        Gb, tq, tk, D, Dv,
        q_bytes=jnp.dtype(q.dtype).itemsize, kv_bytes=kv_bytes,
        out_bytes=jnp.dtype(out_dtype).itemsize,
        kv_buffers=pol["kv_buffers"], use_qs=use_qs, acc_in_out=acc_in_out,
        mult=mult_kv, vmem_limit=pol["vmem_limit"])
    if new_tk != tk:
        tk = new_tk
        Sk_p = _round_up(Sk, tk)

    # wrapper-side padding (padded K columns masked in-kernel; padded Q rows
    # sliced off below)
    if Sq_p != Sq:
        q = jnp.pad(q, ((0, 0), (0, Sq_p - Sq), (0, 0)))
    if Sk_p != Sk:
        k = jnp.pad(k, ((0, 0), (0, Sk_p - Sk), (0, 0)))
        v = jnp.pad(v, ((0, 0), (0, Sk_p - Sk), (0, 0)))

    grid = (G // Gb, Sq_p // tq, Sk_p // tk)

    kernel = functools.partial(
        _flash_attention_kernel, scale=scale, kv_len=Sk, block_k=tk,
        mask_kv=(Sk_p != Sk), acc_in_out=acc_in_out, use_q_scratch=use_qs,
        mxu_dtype=mxu_dtype)

    scratch_shapes = [pltpu.VMEM((Gb, tq, 1), jnp.float32),   # running max m
                      pltpu.VMEM((Gb, tq, 1), jnp.float32)]   # running denom l
    if not acc_in_out:
        scratch_shapes.append(pltpu.VMEM((Gb, tq, Dv), jnp.float32))
    if use_qs:
        scratch_shapes.append(pltpu.VMEM((Gb, tq, D), q.dtype))

    out = pl.pallas_call(
        kernel,
        out_shape=jax.ShapeDtypeStruct((G, Sq_p, Dv), jnp.dtype(out_dtype)),
        grid_spec=pltpu.PrefetchScalarGridSpec(
            num_scalar_prefetch=0,
            grid=grid,
            in_specs=[
                pl.BlockSpec((Gb, tq, D), lambda g, qi, ki: (g, qi, 0)),
                _kv_block_spec((Gb, tk, D), lambda g, qi, ki: (g, ki, 0),
                               pol["kv_buffers"]),
                _kv_block_spec((Gb, tk, Dv), lambda g, qi, ki: (g, ki, 0),
                               pol["kv_buffers"]),
            ],
            out_specs=pl.BlockSpec((Gb, tq, Dv), lambda g, qi, ki: (g, qi, 0)),
            scratch_shapes=scratch_shapes,
        ),
        compiler_params=pltpu.CompilerParams(
            dimension_semantics=("parallel", "parallel", "arbitrary"),
            vmem_limit_bytes=pol["vmem_limit"],
        ),
    )(q, k, v)

    if Sq_p != Sq:
        out = out[:, :Sq, :]
    return out.reshape(B, H, Sq, Dv)


def sdpa_reference(query, key, value, dropout_p=0.0, inv_scale_factor=1.0):
    q = query.astype(jnp.float32)
    k = key.astype(jnp.float32)
    v = value.astype(jnp.float32)
    s = jnp.einsum("bhqd,bhkd->bhqk", q, k) / inv_scale_factor
    p = jax.nn.softmax(s, axis=-1)
    return jnp.einsum("bhqk,bhkd->bhqd", p, v)


if __name__ == "__main__":
    rng = jax.random.PRNGKey(0)
    kq, kk, kv_ = jax.random.split(rng, 3)

    # Small, mutually-consistent attention shapes (B=2, H=3, Sq=16, Sk=8, D=32)
    B, H, Sq, Sk, D = 2, 3, 16, 8, 32
    query = jax.random.normal(kq, (B, H, Sq, D), dtype=jnp.float32)
    key = jax.random.normal(kk, (B, H, Sk, D), dtype=jnp.float32)
    value = jax.random.normal(kv_, (B, H, Sk, D), dtype=jnp.float32)

    for inv_scale in (1.0, 8.0):
        out = jax.block_until_ready(
            sdpa_pallas(query, key, value, dropout_p=0.0,
                        inv_scale_factor=inv_scale))
        ref = sdpa_reference(query, key, value, dropout_p=0.0,
                             inv_scale_factor=inv_scale)
        assert out.shape == (B, H, Sq, D)
        assert jnp.allclose(out, ref, atol=1e-5, rtol=1e-5), \
            f"mismatch vs reference (inv_scale_factor={inv_scale})"

    # Exercise the padding + key-mask path with awkward lengths and small
    # forced block targets (Sq=20 -> padded 24, Sk=12 -> padded 16, masked).
    B2, H2, Sq2, Sk2, D2 = 1, 2, 20, 12, 32
    k1, k2, k3 = jax.random.split(jax.random.PRNGKey(0), 3)
    q2 = jax.random.normal(k1, (B2, H2, Sq2, D2), dtype=jnp.float32)
    key2 = jax.random.normal(k2, (B2, H2, Sk2, D2), dtype=jnp.float32)
    val2 = jax.random.normal(k3, (B2, H2, Sk2, D2), dtype=jnp.float32)
    out2 = jax.block_until_ready(
        sdpa_pallas(q2, key2, val2, dropout_p=0.0, inv_scale_factor=4.0,
                    q_block_target=8, k_block_target=8))
    ref2 = sdpa_reference(q2, key2, val2, dropout_p=0.0, inv_scale_factor=4.0)
    assert out2.shape == (B2, H2, Sq2, D2)
    assert jnp.allclose(out2, ref2, atol=1e-5, rtol=1e-5), \
        "mismatch vs reference (padded / masked path)"

    print("KERNEL_OK")
</pallas_src>

<mosaic_0001>
module attributes {stable_mosaic.version = 11 : i64} {
  func.func @_flash_attention_kernel(%arg0: i32, %arg1: i32, %arg2: i32, %arg3: memref<6x16x32xf32, #tpu.memory_space<vmem>>, %arg4: memref<6x8x32xf32, #tpu.memory_space<vmem>>, %arg5: memref<6x8x32xf32, #tpu.memory_space<vmem>>, %arg6: memref<6x16x32xf32, #tpu.memory_space<vmem>>, %arg7: memref<6x16x1xf32, #tpu.memory_space<vmem>>, %arg8: memref<6x16x1xf32, #tpu.memory_space<vmem>>) attributes {dimension_semantics = [#tpu.dimension_semantics<parallel>, #tpu.dimension_semantics<parallel>, #tpu.dimension_semantics<arbitrary>], iteration_bounds = array<i64: 1, 1, 1>, scalar_prefetch = 0 : i64, scratch_operands = 2 : i64, tpu.core_type = #tpu.core_type<tc>, window_params = [{transform_indices = @transform_0, window_bounds = array<i64: 6, 16, 32>}, {transform_indices = @transform_1, window_bounds = array<i64: 6, 8, 32>}, {transform_indices = @transform_2, window_bounds = array<i64: 6, 8, 32>}, {transform_indices = @transform_3, window_bounds = array<i64: 6, 16, 32>}]} {
    %c0_i32 = arith.constant 0 : i32
    %0 = arith.cmpi eq, %arg2, %c0_i32 : i32
    %1 = arith.extui %0 : i1 to i32
    %c0_i32_0 = arith.constant 0 : i32
    %2 = arith.cmpi ne, %1, %c0_i32_0 : i32
    scf.if %2 {
      %cst_32 = arith.constant 0xFF800000 : f32
      %32 = vector.broadcast %cst_32 : f32 to vector<6x16x1xf32>
      %c0_33 = arith.constant 0 : index
      %c0_34 = arith.constant 0 : index
      %c0_35 = arith.constant 0 : index
      %33 = vector.load %arg7[%c0_33, %c0_34, %c0_35] : memref<6x16x1xf32, #tpu.memory_space<vmem>>, vector<6x16x1xf32>
      tpu.vector_store %arg7[%c0_33, %c0_34, %c0_35], %32 {strides = array<i32>} : memref<6x16x1xf32, #tpu.memory_space<vmem>>, vector<6x16x1xf32>,
      %cst_36 = arith.constant 0.000000e+00 : f32
      %34 = vector.broadcast %cst_36 : f32 to vector<6x16x1xf32>
      %c0_37 = arith.constant 0 : index
      %c0_38 = arith.constant 0 : index
      %c0_39 = arith.constant 0 : index
      %35 = vector.load %arg8[%c0_37, %c0_38, %c0_39] : memref<6x16x1xf32, #tpu.memory_space<vmem>>, vector<6x16x1xf32>
      tpu.vector_store %arg8[%c0_37, %c0_38, %c0_39], %34 {strides = array<i32>} : memref<6x16x1xf32, #tpu.memory_space<vmem>>, vector<6x16x1xf32>,
      %cst_40 = arith.constant 0.000000e+00 : f32
      %36 = vector.broadcast %cst_40 : f32 to vector<6x16x32xf32>
      %c0_41 = arith.constant 0 : index
      %c0_42 = arith.constant 0 : index
      %c0_43 = arith.constant 0 : index
      %37 = vector.load %arg6[%c0_41, %c0_42, %c0_43] : memref<6x16x32xf32, #tpu.memory_space<vmem>>, vector<6x16x32xf32>
      tpu.vector_store %arg6[%c0_41, %c0_42, %c0_43], %36 {strides = array<i32>} : memref<6x16x32xf32, #tpu.memory_space<vmem>>, vector<6x16x32xf32>,
    } else {
    }
    %c0 = arith.constant 0 : index
    %c0_1 = arith.constant 0 : index
    %c0_2 = arith.constant 0 : index
    %3 = vector.load %arg3[%c0, %c0_1, %c0_2] : memref<6x16x32xf32, #tpu.memory_space<vmem>>, vector<6x16x32xf32>
    %c0_3 = arith.constant 0 : index
    %c0_4 = arith.constant 0 : index
    %c0_5 = arith.constant 0 : index
    %4 = vector.load %arg4[%c0_3, %c0_4, %c0_5] : memref<6x8x32xf32, #tpu.memory_space<vmem>>, vector<6x8x32xf32>
    %cst = arith.constant dense<0.000000e+00> : vector<6x16x8xf32>
    %5 = tpu.matmul %3, %4, %cst {dimension_numbers = #tpu.dot_dimension_numbers<[2], [2], [1], [1], [0, 0, 0, 1, 1, 1], [0], [0]>} : vector<6x16x32xf32>, vector<6x8x32xf32>, vector<6x16x8xf32> -> vector<6x16x8xf32>
    %c0_6 = arith.constant 0 : index
    %c0_7 = arith.constant 0 : index
    %c0_8 = arith.constant 0 : index
    %6 = vector.load %arg7[%c0_6, %c0_7, %c0_8] : memref<6x16x1xf32, #tpu.memory_space<vmem>>, vector<6x16x1xf32>
    %cst_9 = arith.constant dense<0xFF800000> : vector<6x16xf32>
    %7 = vector.multi_reduction <maximumf>, %5, %cst_9 [2] : vector<6x16x8xf32> to vector<6x16xf32>
    %8 = vector.shape_cast %7 : vector<6x16xf32> to vector<6x16x1xf32>
    %9 = arith.maximumf %6, %8 : vector<6x16x1xf32>
    %10 = arith.subf %6, %9 : vector<6x16x1xf32>
    %11 = math.exp %10 : vector<6x16x1xf32>
    %12 = vector.broadcast %9 : vector<6x16x1xf32> to vector<6x16x8xf32>
    %13 = arith.subf %5, %12 : vector<6x16x8xf32>
    %14 = math.exp %13 : vector<6x16x8xf32>
    %c0_10 = arith.constant 0 : index
    %c0_11 = arith.constant 0 : index
    %c0_12 = arith.constant 0 : index
    %15 = vector.load %arg8[%c0_10, %c0_11, %c0_12] : memref<6x16x1xf32, #tpu.memory_space<vmem>>, vector<6x16x1xf32>
    %16 = arith.mulf %11, %15 : vector<6x16x1xf32>
    %cst_13 = arith.constant dense<0.000000e+00> : vector<6x16xf32>
    %17 = vector.multi_reduction <add>, %14, %cst_13 [2] : vector<6x16x8xf32> to vector<6x16xf32>
    %18 = vector.shape_cast %17 : vector<6x16xf32> to vector<6x16x1xf32>
    %19 = arith.addf %16, %18 : vector<6x16x1xf32>
    %c0_14 = arith.constant 0 : index
    %c0_15 = arith.constant 0 : index
    %c0_16 = arith.constant 0 : index
    %20 = vector.load %arg8[%c0_14, %c0_15, %c0_16] : memref<6x16x1xf32, #tpu.memory_space<vmem>>, vector<6x16x1xf32>
    tpu.vector_store %arg8[%c0_14, %c0_15, %c0_16], %19 {strides = array<i32>} : memref<6x16x1xf32, #tpu.memory_space<vmem>>, vector<6x16x1xf32>,
    %c0_17 = arith.constant 0 : index
    %c0_18 = arith.constant 0 : index
    %c0_19 = arith.constant 0 : index
    %21 = vector.load %arg5[%c0_17, %c0_18, %c0_19] : memref<6x8x32xf32, #tpu.memory_space<vmem>>, vector<6x8x32xf32>
    %cst_20 = arith.constant dense<0.000000e+00> : vector<6x16x32xf32>
    %22 = tpu.matmul %14, %21, %cst_20 {dimension_numbers = #tpu.dot_dimension_numbers<[2], [1], [1], [2], [0, 0, 0, 1, 1, 2], [0], [0]>} : vector<6x16x8xf32>, vector<6x8x32xf32>, vector<6x16x32xf32> -> vector<6x16x32xf32>
    %c0_21 = arith.constant 0 : index
    %c0_22 = arith.constant 0 : index
    %c0_23 = arith.constant 0 : index
    %23 = vector.load %arg6[%c0_21, %c0_22, %c0_23] : memref<6x16x32xf32, #tpu.memory_space<vmem>>, vector<6x16x32xf32>
    %24 = vector.broadcast %11 : vector<6x16x1xf32> to vector<6x16x32xf32>
    %25 = arith.mulf %24, %23 : vector<6x16x32xf32>
    %26 = arith.addf %25, %22 : vector<6x16x32xf32>
    %c0_24 = arith.constant 0 : index
    %c0_25 = arith.constant 0 : index
    %c0_26 = arith.constant 0 : index
    %27 = vector.load %arg6[%c0_24, %c0_25, %c0_26] : memref<6x16x32xf32, #tpu.memory_space<vmem>>, vector<6x16x32xf32>
    tpu.vector_store %arg6[%c0_24, %c0_25, %c0_26], %26 {strides = array<i32>} : memref<6x16x32xf32, #tpu.memory_space<vmem>>, vector<6x16x32xf32>,
    %c0_27 = arith.constant 0 : index
    %c0_28 = arith.constant 0 : index
    %c0_29 = arith.constant 0 : index
    %28 = vector.load %arg7[%c0_27, %c0_28, %c0_29] : memref<6x16x1xf32, #tpu.memory_space<vmem>>, vector<6x16x1xf32>
    tpu.vector_store %arg7[%c0_27, %c0_28, %c0_29], %9 {strides = array<i32>} : memref<6x16x1xf32, #tpu.memory_space<vmem>>, vector<6x16x1xf32>,
    %c0_i32_30 = arith.constant 0 : i32
    %29 = arith.cmpi eq, %arg2, %c0_i32_30 : i32
    %30 = arith.extui %29 : i1 to i32
    %c0_i32_31 = arith.constant 0 : i32
    %31 = arith.cmpi ne, %30, %c0_i32_31 : i32
    scf.if %31 {
      %c0_32 = arith.constant 0 : index
      %c0_33 = arith.constant 0 : index
      %c0_34 = arith.constant 0 : index
      %32 = vector.load %arg8[%c0_32, %c0_33, %c0_34] : memref<6x16x1xf32, #tpu.memory_space<vmem>>, vector<6x16x1xf32>
      %33 = tpu.reciprocal %32 : vector<6x16x1xf32> -> vector<6x16x1xf32>
      %c0_35 = arith.constant 0 : index
      %c0_36 = arith.constant 0 : index
      %c0_37 = arith.constant 0 : index
      %34 = vector.load %arg6[%c0_35, %c0_36, %c0_37] : memref<6x16x32xf32, #tpu.memory_space<vmem>>, vector<6x16x32xf32>
      %35 = vector.broadcast %33 : vector<6x16x1xf32> to vector<6x16x32xf32>
      %36 = arith.mulf %34, %35 : vector<6x16x32xf32>
      %c0_38 = arith.constant 0 : index
      %c0_39 = arith.constant 0 : index
      %c0_40 = arith.constant 0 : index
      %37 = vector.load %arg6[%c0_38, %c0_39, %c0_40] : memref<6x16x32xf32, #tpu.memory_space<vmem>>, vector<6x16x32xf32>
      tpu.vector_store %arg6[%c0_38, %c0_39, %c0_40], %36 {strides = array<i32>} : memref<6x16x32xf32, #tpu.memory_space<vmem>>, vector<6x16x32xf32>,
    } else {
    }
    return
  }
  func.func @transform_0(%arg0: i32, %arg1: i32, %arg2: i32) -> (i32, i32, i32) {
    %c0_i32 = arith.constant 0 : i32
    %c0_i32_0 = arith.constant 0 : i32
    return %arg0, %arg1, %c0_i32 : i32, i32, i32
  }
  func.func @transform_1(%arg0: i32, %arg1: i32, %arg2: i32) -> (i32, i32, i32) {
    %c0_i32 = arith.constant 0 : i32
    %c0_i32_0 = arith.constant 0 : i32
    return %arg0, %arg2, %c0_i32 : i32, i32, i32
  }
  func.func @transform_2(%arg0: i32, %arg1: i32, %arg2: i32) -> (i32, i32, i32) {
    %c0_i32 = arith.constant 0 : i32
    %c0_i32_0 = arith.constant 0 : i32
    return %arg0, %arg2, %c0_i32 : i32, i32, i32
  }
  func.func @transform_3(%arg0: i32, %arg1: i32, %arg2: i32) -> (i32, i32, i32) {
    %c0_i32 = arith.constant 0 : i32
    %c0_i32_0 = arith.constant 0 : i32
    return %arg0, %arg1, %c0_i32 : i32, i32, i32
  }
}

</mosaic_0001>

<llo_original>
// kernel: tpu_custom_call.1
$region0: #{tpu_custom_call.1}
  #allocation0 [shape = 'u32[]', space=smem, size = 0x4, offset = 0x4, fixed_abs, tag = 'smem constant byte address 0x4 - core index']
  #allocation1 [shape = 'u32[144,128]{1,0:T(1,128)}', space=vmem, size = 0x12000, scoped, tag = 'internal scratch']
  #allocation2 [shape = 'f32[6,16,1]{2,1,0:T(8,128)}', space=vmem, size = 0xc000, scoped, tag = 'scratch operand']
  #allocation3 [shape = 'f32[6,16,1]{2,1,0:T(8,128)}', space=vmem, size = 0xc000, scoped, tag = 'scratch operand']
  %s0 = inlined_call_operand.hbm [shape: f32[6,16,32], index: 0, kind: input, shape index: {}]
  %s1 = inlined_call_operand.hbm [shape: f32[6,8,32], index: 1, kind: input, shape index: {}]
  %s2 = inlined_call_operand.hbm [shape: f32[6,8,32], index: 2, kind: input, shape index: {}]
  %s3 = inlined_call_operand.hbm [shape: f32[6,16,32], index: 3, kind: output, shape index: {}]
  %s4 = sld [smem:[#allocation0]]
  $region42: #{tpu_custom_call.1} parent=0
    _
  %s6 = ssub.s32 1, %s4
  %s7 = scalar_select 0, %s6, %s4
  $region1: #{tpu_custom_call.1} parent=0
    #allocation4 [shape = 'u8[49152]{0}', space=vmem, size = 0xc000, scoped, tag = 'input window, operand 0, single buffered']
    #allocation5 [shape = 's32[1]{0}', space=sflag, size = 0x4, scoped, tag = 'scoped memory for tpu_custom_call.1']
    #allocation6 [shape = 's32[1]{0}', space=sflag, size = 0x4, scoped, tag = 'scoped memory for tpu_custom_call.1']
    #allocation7 [shape = 'u8[24576]{0}', space=vmem, size = 0x6000, scoped, tag = 'input window, operand 1, single buffered']
    #allocation8 [shape = 's32[1]{0}', space=sflag, size = 0x4, scoped, tag = 'scoped memory for tpu_custom_call.1']
    #allocation9 [shape = 'u8[24576]{0}', space=vmem, size = 0x6000, scoped, tag = 'input window, operand 2, single buffered']
    #allocation10 [shape = 'u8[49152]{0}', space=vmem, size = 0xc000, scoped, tag = 'output window, operand 0, single buffered']
    %8 = vsyncpa [#allocation5], 0
    %9 = vsyncpa [#allocation8], 0
    %10 = vsyncpa [#allocation6], 0
    // Predicated region
    $region2: #{tpu_custom_call.1} parent=1 // pred_check
      _
    $region3: #{tpu_custom_call.1} parent=1 // pred_check_branch
      %12 = sbr.rel (0) target = $region5
    $region4: #{tpu_custom_call.1} parent=1 // pred_region
      %s14 = ssub.s32 1536, 1536
      %15 = vsyncadd [#allocation5], %s14
      %s16 = sshll.u32 [#allocation4], 4
      %s17 = int_to_ptr.vmem [resolvable:$true] %s16
      %22 = dma.hbm_to_vmem [thread:$0]  %s0, 1536, %s17, [#allocation5], 128, 128, 8
    $region5: #{tpu_custom_call.1} parent=1 // pred_fallthru
      _
    // Predicated region
    $region6: #{tpu_custom_call.1} parent=1 // pred_check
      _
    $region7: #{tpu_custom_call.1} parent=1 // pred_check_branch
      %24 = sbr.rel (0) target = $region9
    $region8: #{tpu_custom_call.1} parent=1 // pred_region
      %s26 = ssub.s32 768, 768
      %27 = vsyncadd [#allocation8], %s26
      %s28 = sshll.u32 [#allocation7], 4
      %s29 = int_to_ptr.vmem [resolvable:$true] %s28
      %34 = dma.hbm_to_vmem [thread:$0]  %s1, 768, %s29, [#allocation8], 128, 128, 8
    $region9: #{tpu_custom_call.1} parent=1 // pred_fallthru
      _
    // Predicated region
    $region10: #{tpu_custom_call.1} parent=1 // pred_check
      _
    $region11: #{tpu_custom_call.1} parent=1 // pred_check_branch
      %36 = sbr.rel (0) target = $region13
    $region12: #{tpu_custom_call.1} parent=1 // pred_region
      %s38 = ssub.s32 768, 768
      %39 = vsyncadd [#allocation8], %s38
      %s40 = sshll.u32 [#allocation9], 4
      %s41 = int_to_ptr.vmem [resolvable:$true] %s40
      %46 = dma.hbm_to_vmem [thread:$0]  %s2, 768, %s41, [#allocation8], 128, 128, 8
    $region13: #{tpu_custom_call.1} parent=1 // pred_fallthru
      _
    // Predicated region
    $region14: #{tpu_custom_call.1} parent=1 // pred_check
      _
    $region15: #{tpu_custom_call.1} parent=1 // pred_check_branch
      %48 = sbr.rel (0) target = $region17
    $region16: #{tpu_custom_call.1} parent=1 // pred_region
      %49 = dma.done [#allocation5], 1536
    $region17: #{tpu_custom_call.1} parent=1 // pred_fallthru
      _
    // Predicated region
    $region18: #{tpu_custom_call.1} parent=1 // pred_check
      _
    $region19: #{tpu_custom_call.1} parent=1 // pred_check_branch
      %51 = sbr.rel (0) target = $region21
    $region20: #{tpu_custom_call.1} parent=1 // pred_region
      %52 = dma.done [#allocation8], 768
    $region21: #{tpu_custom_call.1} parent=1 // pred_fallthru
      _
    // Predicated region
    $region22: #{tpu_custom_call.1} parent=1 // pred_check
      _
    $region23: #{tpu_custom_call.1} parent=1 // pred_check_branch
      %54 = sbr.rel (0) target = $region25
    $region24: #{tpu_custom_call.1} parent=1 // pred_region
      %55 = dma.done [#allocation8], 768
    $region25: #{tpu_custom_call.1} parent=1 // pred_fallthru
      _
    %p56 = scmp.eq.s32.totalorder 0, 0
    // Predicated region
    $region26: #{tpu_custom_call.1} parent=1 // pred_check
      %p57 = pneg %p56
    $region27: #{tpu_custom_call.1} parent=1 // pred_check_branch
      %59 = sbr.rel (%p57) target = $region29
    $region28: #{tpu_custom_call.1} parent=1 // pred_region
      %vm60 = vcmask 7168
      %61 = vst.msk [vmem:[#allocation2] sm:$0xff] %vm60, -inf
      %62 = vst.msk [vmem:[#allocation2 + $0x8] sm:$0xff] %vm60, -inf
      %63 = vst.msk [vmem:[#allocation2 + $0x10] sm:$0xff] %vm60, -inf
      %64 = vst.msk [vmem:[#allocation2 + $0x18] sm:$0xff] %vm60, -inf
      %65 = vst.msk [vmem:[#allocation2 + $0x20] sm:$0xff] %vm60, -inf
      %66 = vst.msk [vmem:[#allocation2 + $0x28] sm:$0xff] %vm60, -inf
      %67 = vst.msk [vmem:[#allocation2 + $0x30] sm:$0xff] %vm60, -inf
      %68 = vst.msk [vmem:[#allocation2 + $0x38] sm:$0xff] %vm60, -inf
      %69 = vst.msk [vmem:[#allocation2 + $0x40] sm:$0xff] %vm60, -inf
      %70 = vst.msk [vmem:[#allocation2 + $0x48] sm:$0xff] %vm60, -inf
      %71 = vst.msk [vmem:[#allocation2 + $0x50] sm:$0xff] %vm60, -inf
      %72 = vst.msk [vmem:[#allocation2 + $0x58] sm:$0xff] %vm60, -inf
      %73 = vst.msk [vmem:[#allocation3] sm:$0xff] %vm60, 0.0
      %74 = vst.msk [vmem:[#allocation3 + $0x8] sm:$0xff] %vm60, 0.0
      %75 = vst.msk [vmem:[#allocation3 + $0x10] sm:$0xff] %vm60, 0.0
      %76 = vst.msk [vmem:[#allocation3 + $0x18] sm:$0xff] %vm60, 0.0
      %77 = vst.msk [vmem:[#allocation3 + $0x20] sm:$0xff] %vm60, 0.0
      %78 = vst.msk [vmem:[#allocation3 + $0x28] sm:$0xff] %vm60, 0.0
      %79 = vst.msk [vmem:[#allocation3 + $0x30] sm:$0xff] %vm60, 0.0
      %80 = vst.msk [vmem:[#allocation3 + $0x38] sm:$0xff] %vm60, 0.0
      %81 = vst.msk [vmem:[#allocation3 + $0x40] sm:$0xff] %vm60, 0.0
      %82 = vst.msk [vmem:[#allocation3 + $0x48] sm:$0xff] %vm60, 0.0
      %83 = vst.msk [vmem:[#allocation3 + $0x50] sm:$0xff] %vm60, 0.0
      %84 = vst.msk [vmem:[#allocation3 + $0x58] sm:$0xff] %vm60, 0.0
      %vm85 = vcmask 261120
      %86 = vst.msk [vmem:[#allocation10] sm:$0xff] %vm85, 0.0
      %87 = vst.msk [vmem:[#allocation10 + $0x8] sm:$0xff] %vm85, 0.0
      %88 = vst.msk [vmem:[#allocation10 + $0x10] sm:$0xff] %vm85, 0.0
      %89 = vst.msk [vmem:[#allocation10 + $0x18] sm:$0xff] %vm85, 0.0
      %90 = vst.msk [vmem:[#allocation10 + $0x20] sm:$0xff] %vm85, 0.0
      %91 = vst.msk [vmem:[#allocation10 + $0x28] sm:$0xff] %vm85, 0.0
      %92 = vst.msk [vmem:[#allocation10 + $0x30] sm:$0xff] %vm85, 0.0
      %93 = vst.msk [vmem:[#allocation10 + $0x38] sm:$0xff] %vm85, 0.0
      %94 = vst.msk [vmem:[#allocation10 + $0x40] sm:$0xff] %vm85, 0.0
      %95 = vst.msk [vmem:[#allocation10 + $0x48] sm:$0xff] %vm85, 0.0
      %96 = vst.msk [vmem:[#allocation10 + $0x50] sm:$0xff] %vm85, 0.0
      %97 = vst.msk [vmem:[#allocation10 + $0x58] sm:$0xff] %vm85, 0.0
    $region29: #{tpu_custom_call.1} parent=1 // pred_fallthru
      _
    %v98 = vld [vmem:[#allocation4] sm:$0xff]
    %v99 = vld [vmem:[#allocation4 + $0x8] sm:$0xff]
    %v100 = vld [vmem:[#allocation4 + $0x10] sm:$0xff]
    %v101 = vld [vmem:[#allocation4 + $0x18] sm:$0xff]
    %v102 = vld [vmem:[#allocation4 + $0x20] sm:$0xff]
    %v103 = vld [vmem:[#allocation4 + $0x28] sm:$0xff]
    %v104 = vld [vmem:[#allocation4 + $0x30] sm:$0xff]
    %v105 = vld [vmem:[#allocation4 + $0x38] sm:$0xff]
    %v106 = vld [vmem:[#allocation4 + $0x40] sm:$0xff]
    %v107 = vld [vmem:[#allocation4 + $0x48] sm:$0xff]
    %v108 = vld [vmem:[#allocation4 + $0x50] sm:$0xff]
    %v109 = vld [vmem:[#allocation4 + $0x58] sm:$0xff]
    %v110 = vld [vmem:[#allocation7] sm:$0xff]
    %v111 = vld [vmem:[#allocation7 + $0x8] sm:$0xff]
    %v112 = vld [vmem:[#allocation7 + $0x10] sm:$0xff]
    %v113 = vld [vmem:[#allocation7 + $0x18] sm:$0xff]
    %v114 = vld [vmem:[#allocation7 + $0x20] sm:$0xff]
    %v115 = vld [vmem:[#allocation7 + $0x28] sm:$0xff]
    %vm116 = vcmask 261120
    %v118 = vsel %vm116, %v98, 0
    %v121 = vsel %vm116, %v99, 0
    %v124 = vsel %vm116, %v110, 0
    %126 = vmatprep.subr.mxu0 0.0
    %127 = vmatpush1.xpose.msra.mxu0 %v124
    %128 = vmatprep.subr.mxu0 0.0
    %129 = vmatpush1.xpose.msra.mxu0 0.0
    %130 = vmatprep.subr.mxu0 0.0
    %131 = vmatpush1.xpose.msra.mxu0 0.0
    %132 = vmatprep.subr.mxu0 0.0
    %133 = vmatpush1.xpose.msra.mxu0 0.0
    %134 = vmatprep.subr.mxu0 0.0
    %135 = vmatpush1.xpose.msra.mxu0 0.0
    %136 = vmatprep.subr.mxu0 0.0
    %137 = vmatpush1.xpose.msra.mxu0 0.0
    %138 = vmatprep.subr.mxu0 0.0
    %139 = vmatpush1.xpose.msra.mxu0 0.0
    %140 = vmatprep.subr.mxu0 0.0
    %141 = vmatpush1.xpose.msra.mxu0 0.0
    %142 = vmatprep.subr.mxu0 0.0
    %143 = vmatpush1.xpose.msra.mxu0 0.0
    %144 = vmatprep.subr.mxu0 0.0
    %145 = vmatpush1.xpose.msra.mxu0 0.0
    %146 = vmatprep.subr.mxu0 0.0
    %147 = vmatpush1.xpose.msra.mxu0 0.0
    %148 = vmatprep.subr.mxu0 0.0
    %149 = vmatpush1.xpose.msra.mxu0 0.0
    %150 = vmatprep.subr.mxu0 0.0
    %151 = vmatpush1.xpose.msra.mxu0 0.0
    %152 = vmatprep.subr.mxu0 0.0
    %153 = vmatpush1.xpose.msra.mxu0 0.0
    %154 = vmatprep.subr.mxu0 0.0
    %155 = vmatpush1.xpose.msra.mxu0 0.0
    %156 = vmatprep.subr.mxu0 0.0
    %157 = vmatpush1.xpose.msra.mxu0 0.0
    %158 = vmatprep.subr.mxu0 0.0
    %159 = vmatpush1.xpose.msra.mxu0 0.0
    %160 = vmatprep.subr.mxu0 0.0
    %161 = vmatpush1.xpose.msra.mxu0 0.0
    %162 = vmatprep.subr.mxu0 0.0
    %163 = vmatpush1.xpose.msra.mxu0 0.0
    %164 = vmatprep.subr.mxu0 0.0
    %165 = vmatpush1.xpose.msra.mxu0 0.0
    %166 = vmatprep.subr.mxu0 0.0
    %167 = vmatpush1.xpose.msra.mxu0 0.0
    %168 = vmatprep.subr.mxu0 0.0
    %169 = vmatpush1.xpose.msra.mxu0 0.0
    %170 = vmatprep.subr.mxu0 0.0
    %171 = vmatpush1.xpose.msra.mxu0 0.0
    %172 = vmatprep.subr.mxu0 0.0
    %173 = vmatpush1.xpose.msra.mxu0 0.0
    %174 = vmatprep.subr.mxu0 0.0
    %175 = vmatpush1.xpose.msra.mxu0 0.0
    %176 = vmatprep.subr.mxu0 0.0
    %177 = vmatpush1.xpose.msra.mxu0 0.0
    %178 = vmatprep.subr.mxu0 0.0
    %179 = vmatpush1.xpose.msra.mxu0 0.0
    %180 = vmatprep.subr.mxu0 0.0
    %181 = vmatpush1.xpose.msra.mxu0 0.0
    %182 = vmatprep.subr.mxu0 0.0
    %183 = vmatpush1.xpose.msra.mxu0 0.0
    %184 = vmatprep.subr.mxu0 0.0
    %185 = vmatpush1.xpose.msra.mxu0 0.0
    %186 = vmatprep.subr.mxu0 0.0
    %187 = vmatpush1.xpose.msra.mxu0 0.0
    %188 = vmatprep.subr.mxu0 0.0
    %189 = vmatpush1.xpose.msra.mxu0 0.0
    %190 = vmatprep.mubr.f32.mxu0 0.0
    %191 = vmatmul.mubr.f32.gmra.mrb[0].mxu0 %v118
    %v192 = vpop.f32.mrb[0].mxu0
    %v193 = vadd.f32 0.0, %v192
    %v194 = vpop.f32.mrb[0].mxu0
    %195 = vmatprep.mubr.f32.mxu0 0.0
    %196 = vmatmul.mubr.f32.gmra.mrb[0].mxu0 %v121
    %v197 = vpop.f32.mrb[0].mxu0
    %v198 = vadd.f32 0.0, %v197
    %v199 = vpop.f32.mrb[0].mxu0
    %200 = vdwg.mxu0
    %v202 = vsel %vm116, %v100, 0
    %v205 = vsel %vm116, %v101, 0
    %v208 = vsel %vm116, %v111, 0
    %210 = vmatprep.subr.mxu0 0.0
    %211 = vmatpush1.xpose.msra.mxu0 %v208
    %212 = vmatprep.subr.mxu0 0.0
    %213 = vmatpush1.xpose.msra.mxu0 0.0
    %214 = vmatprep.subr.mxu0 0.0
    %215 = vmatpush1.xpose.msra.mxu0 0.0
    %216 = vmatprep.subr.mxu0 0.0
    %217 = vmatpush1.xpose.msra.mxu0 0.0
    %218 = vmatprep.subr.mxu0 0.0
    %219 = vmatpush1.xpose.msra.mxu0 0.0
    %220 = vmatprep.subr.mxu0 0.0
    %221 = vmatpush1.xpose.msra.mxu0 0.0
    %222 = vmatprep.subr.mxu0 0.0
    %223 = vmatpush1.xpose.msra.mxu0 0.0
    %224 = vmatprep.subr.mxu0 0.0
    %225 = vmatpush1.xpose.msra.mxu0 0.0
    %226 = vmatprep.subr.mxu0 0.0
    %227 = vmatpush1.xpose.msra.mxu0 0.0
    %228 = vmatprep.subr.mxu0 0.0
    %229 = vmatpush1.xpose.msra.mxu0 0.0
    %230 = vmatprep.subr.mxu0 0.0
    %231 = vmatpush1.xpose.msra.mxu0 0.0
    %232 = vmatprep.subr.mxu0 0.0
    %233 = vmatpush1.xpose.msra.mxu0 0.0
    %234 = vmatprep.subr.mxu0 0.0
    %235 = vmatpush1.xpose.msra.mxu0 0.0
    %236 = vmatprep.subr.mxu0 0.0
    %237 = vmatpush1.xpose.msra.mxu0 0.0
    %238 = vmatprep.subr.mxu0 0.0
    %239 = vmatpush1.xpose.msra.mxu0 0.0
    %240 = vmatprep.subr.mxu0 0.0
    %241 = vmatpush1.xpose.msra.mxu0 0.0
    %242 = vmatprep.subr.mxu0 0.0
    %243 = vmatpush1.xpose.msra.mxu0 0.0
    %244 = vmatprep.subr.mxu0 0.0
    %245 = vmatpush1.xpose.msra.mxu0 0.0
    %246 = vmatprep.subr.mxu0 0.0
    %247 = vmatpush1.xpose.msra.mxu0 0.0
    %248 = vmatprep.subr.mxu0 0.0
    %249 = vmatpush1.xpose.msra.mxu0 0.0
    %250 = vmatprep.subr.mxu0 0.0
    %251 = vmatpush1.xpose.msra.mxu0 0.0
    %252 = vmatprep.subr.mxu0 0.0
    %253 = vmatpush1.xpose.msra.mxu0 0.0
    %254 = vmatprep.subr.mxu0 0.0
    %255 = vmatpush1.xpose.msra.mxu0 0.0
    %256 = vmatprep.subr.mxu0 0.0
    %257 = vmatpush1.xpose.msra.mxu0 0.0
    %258 = vmatprep.subr.mxu0 0.0
    %259 = vmatpush1.xpose.msra.mxu0 0.0
    %260 = vmatprep.subr.mxu0 0.0
    %261 = vmatpush1.xpose.msra.mxu0 0.0
    %262 = vmatprep.subr.mxu0 0.0
    %263 = vmatpush1.xpose.msra.mxu0 0.0
    %264 = vmatprep.subr.mxu0 0.0
    %265 = vmatpush1.xpose.msra.mxu0 0.0
    %266 = vmatprep.subr.mxu0 0.0
    %267 = vmatpush1.xpose.msra.mxu0 0.0
    %268 = vmatprep.subr.mxu0 0.0
    %269 = vmatpush1.xpose.msra.mxu0 0.0
    %270 = vmatprep.subr.mxu0 0.0
    %271 = vmatpush1.xpose.msra.mxu0 0.0
    %272 = vmatprep.subr.mxu0 0.0
    %273 = vmatpush1.xpose.msra.mxu0 0.0
    %274 = vmatprep.mubr.f32.mxu0 0.0
    %275 = vmatmul.mubr.f32.gmra.mrb[0].mxu0 %v202
    %v276 = vpop.f32.mrb[0].mxu0
    %v277 = vadd.f32 0.0, %v276
    %v278 = vpop.f32.mrb[0].mxu0
    %279 = vmatprep.mubr.f32.mxu0 0.0
    %280 = vmatmul.mubr.f32.gmra.mrb[0].mxu0 %v205
    %v281 = vpop.f32.mrb[0].mxu0
    %v282 = vadd.f32 0.0, %v281
    %v283 = vpop.f32.mrb[0].mxu0
    %284 = vdwg.mxu0
    %v286 = vsel %vm116, %v102, 0
    %v289 = vsel %vm116, %v103, 0
    %v292 = vsel %vm116, %v112, 0
    %294 = vmatprep.subr.mxu0 0.0
    %295 = vmatpush1.xpose.msra.mxu0 %v292
    %296 = vmatprep.subr.mxu0 0.0
    %297 = vmatpush1.xpose.msra.mxu0 0.0
    %298 = vmatprep.subr.mxu0 0.0
    %299 = vmatpush1.xpose.msra.mxu0 0.0
    %300 = vmatprep.subr.mxu0 0.0
    %301 = vmatpush1.xpose.msra.mxu0 0.0
    %302 = vmatprep.subr.mxu0 0.0
    %303 = vmatpush1.xpose.msra.mxu0 0.0
    %304 = vmatprep.subr.mxu0 0.0
    %305 = vmatpush1.xpose.msra.mxu0 0.0
    %306 = vmatprep.subr.mxu0 0.0
    %307 = vmatpush1.xpose.msra.mxu0 0.0
    %308 = vmatprep.subr.mxu0 0.0
    %309 = vmatpush1.xpose.msra.mxu0 0.0
    %310 = vmatprep.subr.mxu0 0.0
    %311 = vmatpush1.xpose.msra.mxu0 0.0
    %312 = vmatprep.subr.mxu0 0.0
    %313 = vmatpush1.xpose.msra.mxu0 0.0
    %314 = vmatprep.subr.mxu0 0.0
    %315 = vmatpush1.xpose.msra.mxu0 0.0
    %316 = vmatprep.subr.mxu0 0.0
    %317 = vmatpush1.xpose.msra.mxu0 0.0
    %318 = vmatprep.subr.mxu0 0.0
    %319 = vmatpush1.xpose.msra.mxu0 0.0
    %320 = vmatprep.subr.mxu0 0.0
    %321 = vmatpush1.xpose.msra.mxu0 0.0
    %322 = vmatprep.subr.mxu0 0.0
    %323 = vmatpush1.xpose.msra.mxu0 0.0
    %324 = vmatprep.subr.mxu0 0.0
    %325 = vmatpush1.xpose.msra.mxu0 0.0
    %326 = vmatprep.subr.mxu0 0.0
    %327 = vmatpush1.xpose.msra.mxu0 0.0
    %328 = vmatprep.subr.mxu0 0.0
    %329 = vmatpush1.xpose.msra.mxu0 0.0
    %330 = vmatprep.subr.mxu0 0.0
    %331 = vmatpush1.xpose.msra.mxu0 0.0
    %332 = vmatprep.subr.mxu0 0.0
    %333 = vmatpush1.xpose.msra.mxu0 0.0
    %334 = vmatprep.subr.mxu0 0.0
    %335 = vmatpush1.xpose.msra.mxu0 0.0
    %336 = vmatprep.subr.mxu0 0.0
    %337 = vmatpush1.xpose.msra.mxu0 0.0
    %338 = vmatprep.subr.mxu0 0.0
    %339 = vmatpush1.xpose.msra.mxu0 0.0
    %340 = vmatprep.subr.mxu0 0.0
    %341 = vmatpush1.xpose.msra.mxu0 0.0
    %342 = vmatprep.subr.mxu0 0.0
    %343 = vmatpush1.xpose.msra.mxu0 0.0
    %344 = vmatprep.subr.mxu0 0.0
    %345 = vmatpush1.xpose.msra.mxu0 0.0
    %346 = vmatprep.subr.mxu0 0.0
    %347 = vmatpush1.xpose.msra.mxu0 0.0
    %348 = vmatprep.subr.mxu0 0.0
    %349 = vmatpush1.xpose.msra.mxu0 0.0
    %350 = vmatprep.subr.mxu0 0.0
    %351 = vmatpush1.xpose.msra.mxu0 0.0
    %352 = vmatprep.subr.mxu0 0.0
    %353 = vmatpush1.xpose.msra.mxu0 0.0
    %354 = vmatprep.subr.mxu0 0.0
    %355 = vmatpush1.xpose.msra.mxu0 0.0
    %356 = vmatprep.subr.mxu0 0.0
    %357 = vmatpush1.xpose.msra.mxu0 0.0
    %358 = vmatprep.mubr.f32.mxu0 0.0
    %359 = vmatmul.mubr.f32.gmra.mrb[0].mxu0 %v286
    %v360 = vpop.f32.mrb[0].mxu0
    %v361 = vadd.f32 0.0, %v360
    %v362 = vpop.f32.mrb[0].mxu0
    %363 = vmatprep.mubr.f32.mxu0 0.0
    %364 = vmatmul.mubr.f32.gmra.mrb[0].mxu0 %v289
    %v365 = vpop.f32.mrb[0].mxu0
    %v366 = vadd.f32 0.0, %v365
    %v367 = vpop.f32.mrb[0].mxu0
    %368 = vdwg.mxu0
    %v370 = vsel %vm116, %v104, 0
    %v373 = vsel %vm116, %v105, 0
    %v376 = vsel %vm116, %v113, 0
    %378 = vmatprep.subr.mxu0 0.0
    %379 = vmatpush1.xpose.msra.mxu0 %v376
    %380 = vmatprep.subr.mxu0 0.0
    %381 = vmatpush1.xpose.msra.mxu0 0.0
    %382 = vmatprep.subr.mxu0 0.0
    %383 = vmatpush1.xpose.msra.mxu0 0.0
    %384 = vmatprep.subr.mxu0 0.0
    %385 = vmatpush1.xpose.msra.mxu0 0.0
    %386 = vmatprep.subr.mxu0 0.0
    %387 = vmatpush1.xpose.msra.mxu0 0.0
    %388 = vmatprep.subr.mxu0 0.0
    %389 = vmatpush1.xpose.msra.mxu0 0.0
    %390 = vmatprep.subr.mxu0 0.0
    %391 = vmatpush1.xpose.msra.mxu0 0.0
    %392 = vmatprep.subr.mxu0 0.0
    %393 = vmatpush1.xpose.msra.mxu0 0.0
    %394 = vmatprep.subr.mxu0 0.0
    %395 = vmatpush1.xpose.msra.mxu0 0.0
    %396 = vmatprep.subr.mxu0 0.0
    %397 = vmatpush1.xpose.msra.mxu0 0.0
    %398 = vmatprep.subr.mxu0 0.0
    %399 = vmatpush1.xpose.msra.mxu0 0.0
    %400 = vmatprep.subr.mxu0 0.0
    %401 = vmatpush1.xpose.msra.mxu0 0.0
    %402 = vmatprep.subr.mxu0 0.0
    %403 = vmatpush1.xpose.msra.mxu0 0.0
    %404 = vmatprep.subr.mxu0 0.0
    %405 = vmatpush1.xpose.msra.mxu0 0.0
    %406 = vmatprep.subr.mxu0 0.0
    %407 = vmatpush1.xpose.msra.mxu0 0.0
    %408 = vmatprep.subr.mxu0 0.0
    %409 = vmatpush1.xpose.msra.mxu0 0.0
    %410 = vmatprep.subr.mxu0 0.0
    %411 = vmatpush1.xpose.msra.mxu0 0.0
    %412 = vmatprep.subr.mxu0 0.0
    %413 = vmatpush1.xpose.msra.mxu0 0.0
    %414 = vmatprep.subr.mxu0 0.0
    %415 = vmatpush1.xpose.msra.mxu0 0.0
    %416 = vmatprep.subr.mxu0 0.0
    %417 = vmatpush1.xpose.msra.mxu0 0.0
    %418 = vmatprep.subr.mxu0 0.0
    %419 = vmatpush1.xpose.msra.mxu0 0.0
    %420 = vmatprep.subr.mxu0 0.0
    %421 = vmatpush1.xpose.msra.mxu0 0.0
    %422 = vmatprep.subr.mxu0 0.0
    %423 = vmatpush1.xpose.msra.mxu0 0.0
    %424 = vmatprep.subr.mxu0 0.0
    %425 = vmatpush1.xpose.msra.mxu0 0.0
    %426 = vmatprep.subr.mxu0 0.0
    %427 = vmatpush1.xpose.msra.mxu0 0.0
    %428 = vmatprep.subr.mxu0 0.0
    %429 = vmatpush1.xpose.msra.mxu0 0.0
    %430 = vmatprep.subr.mxu0 0.0
    %431 = vmatpush1.xpose.msra.mxu0 0.0
    %432 = vmatprep.subr.mxu0 0.0
    %433 = vmatpush1.xpose.msra.mxu0 0.0
    %434 = vmatprep.subr.mxu0 0.0
    %435 = vmatpush1.xpose.msra.mxu0 0.0
    %436 = vmatprep.subr.mxu0 0.0
    %437 = vmatpush1.xpose.msra.mxu0 0.0
    %438 = vmatprep.subr.mxu0 0.0
    %439 = vmatpush1.xpose.msra.mxu0 0.0
    %440 = vmatprep.subr.mxu0 0.0
    %441 = vmatpush1.xpose.msra.mxu0 0.0
    %442 = vmatprep.mubr.f32.mxu0 0.0
    %443 = vmatmul.mubr.f32.gmra.mrb[0].mxu0 %v370
    %v444 = vpop.f32.mrb[0].mxu0
    %v445 = vadd.f32 0.0, %v444
    %v446 = vpop.f32.mrb[0].mxu0
    %447 = vmatprep.mubr.f32.mxu0 0.0
    %448 = vmatmul.mubr.f32.gmra.mrb[0].mxu0 %v373
    %v449 = vpop.f32.mrb[0].mxu0
    %v450 = vadd.f32 0.0, %v449
    %v451 = vpop.f32.mrb[0].mxu0
    %452 = vdwg.mxu0
    %v454 = vsel %vm116, %v106, 0
    %v457 = vsel %vm116, %v107, 0
    %v460 = vsel %vm116, %v114, 0
    %462 = vmatprep.subr.mxu0 0.0
    %463 = vmatpush1.xpose.msra.mxu0 %v460
    %464 = vmatprep.subr.mxu0 0.0
    %465 = vmatpush1.xpose.msra.mxu0 0.0
    %466 = vmatprep.subr.mxu0 0.0
    %467 = vmatpush1.xpose.msra.mxu0 0.0
    %468 = vmatprep.subr.mxu0 0.0
    %469 = vmatpush1.xpose.msra.mxu0 0.0
    %470 = vmatprep.subr.mxu0 0.0
    %471 = vmatpush1.xpose.msra.mxu0 0.0
    %472 = vmatprep.subr.mxu0 0.0
    %473 = vmatpush1.xpose.msra.mxu0 0.0
    %474 = vmatprep.subr.mxu0 0.0
    %475 = vmatpush1.xpose.msra.mxu0 0.0
    %476 = vmatprep.subr.mxu0 0.0
    %477 = vmatpush1.xpose.msra.mxu0 0.0
    %478 = vmatprep.subr.mxu0 0.0
    %479 = vmatpush1.xpose.msra.mxu0 0.0
    %480 = vmatprep.subr.mxu0 0.0
    %481 = vmatpush1.xpose.msra.mxu0 0.0
    %482 = vmatprep.subr.mxu0 0.0
    %483 = vmatpush1.xpose.msra.mxu0 0.0
    %484 = vmatprep.subr.mxu0 0.0
    %485 = vmatpush1.xpose.msra.mxu0 0.0
    %486 = vmatprep.subr.mxu0 0.0
    %487 = vmatpush1.xpose.msra.mxu0 0.0
    %488 = vmatprep.subr.mxu0 0.0
    %489 = vmatpush1.xpose.msra.mxu0 0.0
    %490 = vmatprep.subr.mxu0 0.0
    %491 = vmatpush1.xpose.msra.mxu0 0.0
    %492 = vmatprep.subr.mxu0 0.0
    %493 = vmatpush1.xpose.msra.mxu0 0.0
    %494 = vmatprep.subr.mxu0 0.0
    %495 = vmatpush1.xpose.msra.mxu0 0.0
    %496 = vmatprep.subr.mxu0 0.0
    %497 = vmatpush1.xpose.msra.mxu0 0.0
    %498 = vmatprep.subr.mxu0 0.0
    %499 = vmatpush1.xpose.msra.mxu0 0.0
    %500 = vmatprep.subr.mxu0 0.0
    %501 = vmatpush1.xpose.msra.mxu0 0.0
    %502 = vmatprep.subr.mxu0 0.0
    %503 = vmatpush1.xpose.msra.mxu0 0.0
    %504 = vmatprep.subr.mxu0 0.0
    %505 = vmatpush1.xpose.msra.mxu0 0.0
    %506 = vmatprep.subr.mxu0 0.0
    %507 = vmatpush1.xpose.msra.mxu0 0.0
    %508 = vmatprep.subr.mxu0 0.0
    %509 = vmatpush1.xpose.msra.mxu0 0.0
    %510 = vmatprep.subr.mxu0 0.0
    %511 = vmatpush1.xpose.msra.mxu0 0.0
    %512 = vmatprep.subr.mxu0 0.0
    %513 = vmatpush1.xpose.msra.mxu0 0.0
    %514 = vmatprep.subr.mxu0 0.0
    %515 = vmatpush1.xpose.msra.mxu0 0.0
    %516 = vmatprep.subr.mxu0 0.0
    %517 = vmatpush1.xpose.msra.mxu0 0.0
    %518 = vmatprep.subr.mxu0 0.0
    %519 = vmatpush1.xpose.msra.mxu0 0.0
    %520 = vmatprep.subr.mxu0 0.0
    %521 = vmatpush1.xpose.msra.mxu0 0.0
    %522 = vmatprep.subr.mxu0 0.0
    %523 = vmatpush1.xpose.msra.mxu0 0.0
    %524 = vmatprep.subr.mxu0 0.0
    %525 = vmatpush1.xpose.msra.mxu0 0.0
    %526 = vmatprep.mubr.f32.mxu0 0.0
    %527 = vmatmul.mubr.f32.gmra.mrb[0].mxu0 %v454
    %v528 = vpop.f32.mrb[0].mxu0
    %v529 = vadd.f32 0.0, %v528
    %v530 = vpop.f32.mrb[0].mxu0
    %531 = vmatprep.mubr.f32.mxu0 0.0
    %532 = vmatmul.mubr.f32.gmra.mrb[0].mxu0 %v457
    %v533 = vpop.f32.mrb[0].mxu0
    %v534 = vadd.f32 0.0, %v533
    %v535 = vpop.f32.mrb[0].mxu0
    %536 = vdwg.mxu0
    %v538 = vsel %vm116, %v108, 0
    %v541 = vsel %vm116, %v109, 0
    %v544 = vsel %vm116, %v115, 0
    %546 = vmatprep.subr.mxu0 0.0
    %547 = vmatpush1.xpose.msra.mxu0 %v544
    %548 = vmatprep.subr.mxu0 0.0
    %549 = vmatpush1.xpose.msra.mxu0 0.0
    %550 = vmatprep.subr.mxu0 0.0
    %551 = vmatpush1.xpose.msra.mxu0 0.0
    %552 = vmatprep.subr.mxu0 0.0
    %553 = vmatpush1.xpose.msra.mxu0 0.0
    %554 = vmatprep.subr.mxu0 0.0
    %555 = vmatpush1.xpose.msra.mxu0 0.0
    %556 = vmatprep.subr.mxu0 0.0
    %557 = vmatpush1.xpose.msra.mxu0 0.0
    %558 = vmatprep.subr.mxu0 0.0
    %559 = vmatpush1.xpose.msra.mxu0 0.0
    %560 = vmatprep.subr.mxu0 0.0
    %561 = vmatpush1.xpose.msra.mxu0 0.0
    %562 = vmatprep.subr.mxu0 0.0
    %563 = vmatpush1.xpose.msra.mxu0 0.0
    %564 = vmatprep.subr.mxu0 0.0
    %565 = vmatpush1.xpose.msra.mxu0 0.0
    %566 = vmatprep.subr.mxu0 0.0
    %567 = vmatpush1.xpose.msra.mxu0 0.0
    %568 = vmatprep.subr.mxu0 0.0
    %569 = vmatpush1.xpose.msra.mxu0 0.0
    %570 = vmatprep.subr.mxu0 0.0
    %571 = vmatpush1.xpose.msra.mxu0 0.0
    %572 = vmatprep.subr.mxu0 0.0
    %573 = vmatpush1.xpose.msra.mxu0 0.0
    %574 = vmatprep.subr.mxu0 0.0
    %575 = vmatpush1.xpose.msra.mxu0 0.0
    %576 = vmatprep.subr.mxu0 0.0
    %577 = vmatpush1.xpose.msra.mxu0 0.0
    %578 = vmatprep.subr.mxu0 0.0
    %579 = vmatpush1.xpose.msra.mxu0 0.0
    %580 = vmatprep.subr.mxu0 0.0
    %581 = vmatpush1.xpose.msra.mxu0 0.0
    %582 = vmatprep.subr.mxu0 0.0
    %583 = vmatpush1.xpose.msra.mxu0 0.0
    %584 = vmatprep.subr.mxu0 0.0
    %585 = vmatpush1.xpose.msra.mxu0 0.0
    %586 = vmatprep.subr.mxu0 0.0
    %587 = vmatpush1.xpose.msra.mxu0 0.0
    %588 = vmatprep.subr.mxu0 0.0
    %589 = vmatpush1.xpose.msra.mxu0 0.0
    %590 = vmatprep.subr.mxu0 0.0
    %591 = vmatpush1.xpose.msra.mxu0 0.0
    %592 = vmatprep.subr.mxu0 0.0
    %593 = vmatpush1.xpose.msra.mxu0 0.0
    %594 = vmatprep.subr.mxu0 0.0
    %595 = vmatpush1.xpose.msra.mxu0 0.0
    %596 = vmatprep.subr.mxu0 0.0
    %597 = vmatpush1.xpose.msra.mxu0 0.0
    %598 = vmatprep.subr.mxu0 0.0
    %599 = vmatpush1.xpose.msra.mxu0 0.0
    %600 = vmatprep.subr.mxu0 0.0
    %601 = vmatpush1.xpose.msra.mxu0 0.0
    %602 = vmatprep.subr.mxu0 0.0
    %603 = vmatpush1.xpose.msra.mxu0 0.0
    %604 = vmatprep.subr.mxu0 0.0
    %605 = vmatpush1.xpose.msra.mxu0 0.0
    %606 = vmatprep.subr.mxu0 0.0
    %607 = vmatpush1.xpose.msra.mxu0 0.0
    %608 = vmatprep.subr.mxu0 0.0
    %609 = vmatpush1.xpose.msra.mxu0 0.0
    %610 = vmatprep.mubr.f32.mxu0 0.0
    %611 = vmatmul.mubr.f32.gmra.mrb[0].mxu0 %v538
    %v612 = vpop.f32.mrb[0].mxu0
    %v613 = vadd.f32 0.0, %v612
    %v614 = vpop.f32.mrb[0].mxu0
    %615 = vmatprep.mubr.f32.mxu0 0.0
    %616 = vmatmul.mubr.f32.gmra.mrb[0].mxu0 %v541
    %v617 = vpop.f32.mrb[0].mxu0
    %v618 = vadd.f32 0.0, %v617
    %v619 = vpop.f32.mrb[0].mxu0
    %620 = vdwg.mxu0
    %v621 = vld [vmem:[#allocation2] sm:$0xff]
    %v622 = vld [vmem:[#allocation2 + $0x8] sm:$0xff]
    %v623 = vld [vmem:[#allocation2 + $0x10] sm:$0xff]
    %v624 = vld [vmem:[#allocation2 + $0x18] sm:$0xff]
    %v625 = vld [vmem:[#allocation2 + $0x20] sm:$0xff]
    %v626 = vld [vmem:[#allocation2 + $0x28] sm:$0xff]
    %v627 = vld [vmem:[#allocation2 + $0x30] sm:$0xff]
    %v628 = vld [vmem:[#allocation2 + $0x38] sm:$0xff]
    %v629 = vld [vmem:[#allocation2 + $0x40] sm:$0xff]
    %v630 = vld [vmem:[#allocation2 + $0x48] sm:$0xff]
    %v631 = vld [vmem:[#allocation2 + $0x50] sm:$0xff]
    %v632 = vld [vmem:[#allocation2 + $0x58] sm:$0xff]
    %vm633 = vcmask 64512
    %v634 = vsel %vm633, %v193, -inf
    %635 = vmax.xlane.f32.xlu0 %v634
    %v636 = vpop.xlane.xlu0 %635
    %v637 = vsel %vm633, %v198, -inf
    %638 = vmax.xlane.f32.xlu0 %v637
    %v639 = vpop.xlane.xlu0 %638
    %v640 = vsel %vm633, %v277, -inf
    %641 = vmax.xlane.f32.xlu0 %v640
    %v642 = vpop.xlane.xlu0 %641
    %v643 = vsel %vm633, %v282, -inf
    %644 = vmax.xlane.f32.xlu0 %v643
    %v645 = vpop.xlane.xlu0 %644
    %v646 = vsel %vm633, %v361, -inf
    %647 = vmax.xlane.f32.xlu0 %v646
    %v648 = vpop.xlane.xlu0 %647
    %v649 = vsel %vm633, %v366, -inf
    %650 = vmax.xlane.f32.xlu0 %v649
    %v651 = vpop.xlane.xlu0 %650
    %v652 = vsel %vm633, %v445, -inf
    %653 = vmax.xlane.f32.xlu0 %v652
    %v654 = vpop.xlane.xlu0 %653
    %v655 = vsel %vm633, %v450, -inf
    %656 = vmax.xlane.f32.xlu0 %v655
    %v657 = vpop.xlane.xlu0 %656
    %v658 = vsel %vm633, %v529, -inf
    %659 = vmax.xlane.f32.xlu0 %v658
    %v660 = vpop.xlane.xlu0 %659
    %v661 = vsel %vm633, %v534, -inf
    %662 = vmax.xlane.f32.xlu0 %v661
    %v663 = vpop.xlane.xlu0 %662
    %v664 = vsel %vm633, %v613, -inf
    %665 = vmax.xlane.f32.xlu0 %v664
    %v666 = vpop.xlane.xlu0 %665
    %v667 = vsel %vm633, %v618, -inf
    %668 = vmax.xlane.f32.xlu0 %v667
    %v669 = vpop.xlane.xlu0 %668
    %v670 = vmax.f32 %v621, %v636
    %v671 = vmax.f32 %v622, %v639
    %v672 = vmax.f32 %v623, %v642
    %v673 = vmax.f32 %v624, %v645
    %v674 = vmax.f32 %v625, %v648
    %v675 = vmax.f32 %v626, %v651
    %v676 = vmax.f32 %v627, %v654
    %v677 = vmax.f32 %v628, %v657
    %v678 = vmax.f32 %v629, %v660
    %v679 = vmax.f32 %v630, %v663
    %v680 = vmax.f32 %v631, %v666
    %v681 = vmax.f32 %v632, %v669
    %v682 = vsub.f32 %v621, %v670
    %v683 = vsub.f32 %v622, %v671
    %v684 = vsub.f32 %v623, %v672
    %v685 = vsub.f32 %v624, %v673
    %v686 = vsub.f32 %v625, %v674
    %v687 = vsub.f32 %v626, %v675
    %v688 = vsub.f32 %v627, %v676
    %v689 = vsub.f32 %v628, %v677
    %v690 = vsub.f32 %v629, %v678
    %v691 = vsub.f32 %v630, %v679
    %v692 = vsub.f32 %v631, %v680
    %v693 = vsub.f32 %v632, %v681
    %v694 = vmul.f32 %v682, 1.442695
    %v695 = vpow.pop %v694
    %v696 = vmul.f32 %v683, 1.442695
    %v697 = vpow.pop %v696
    %v698 = vmul.f32 %v684, 1.442695
    %v699 = vpow.pop %v698
    %v700 = vmul.f32 %v685, 1.442695
    %v701 = vpow.pop %v700
    %v702 = vmul.f32 %v686, 1.442695
    %v703 = vpow.pop %v702
    %v704 = vmul.f32 %v687, 1.442695
    %v705 = vpow.pop %v704
    %v706 = vmul.f32 %v688, 1.442695
    %v707 = vpow.pop %v706
    %v708 = vmul.f32 %v689, 1.442695
    %v709 = vpow.pop %v708
    %v710 = vmul.f32 %v690, 1.442695
    %v711 = vpow.pop %v710
    %v712 = vmul.f32 %v691, 1.442695
    %v713 = vpow.pop %v712
    %v714 = vmul.f32 %v692, 1.442695
    %v715 = vpow.pop %v714
    %v716 = vmul.f32 %v693, 1.442695
    %v717 = vpow.pop %v716
    %719 = vset.pattern.permute.xlu0 0
    %720 = vperm.xlu0 %719, %v670
    %v721 = vpop.permute.xlu0 %720
    %724 = vset.pattern.permute.xlu0 0
    %725 = vperm.xlu0 %724, %v671
    %v726 = vpop.permute.xlu0 %725
    %729 = vset.pattern.permute.xlu0 0
    %730 = vperm.xlu0 %729, %v672
    %v731 = vpop.permute.xlu0 %730
    %734 = vset.pattern.permute.xlu0 0
    %735 = vperm.xlu0 %734, %v673
    %v736 = vpop.permute.xlu0 %735
    %739 = vset.pattern.permute.xlu0 0
    %740 = vperm.xlu0 %739, %v674
    %v741 = vpop.permute.xlu0 %740
    %744 = vset.pattern.permute.xlu0 0
    %745 = vperm.xlu0 %744, %v675
    %v746 = vpop.permute.xlu0 %745
    %749 = vset.pattern.permute.xlu0 0
    %750 = vperm.xlu0 %749, %v676
    %v751 = vpop.permute.xlu0 %750
    %754 = vset.pattern.permute.xlu0 0
    %755 = vperm.xlu0 %754, %v677
    %v756 = vpop.permute.xlu0 %755
    %759 = vset.pattern.permute.xlu0 0
    %760 = vperm.xlu0 %759, %v678
    %v761 = vpop.permute.xlu0 %760
    %764 = vset.pattern.permute.xlu0 0
    %765 = vperm.xlu0 %764, %v679
    %v766 = vpop.permute.xlu0 %765
    %769 = vset.pattern.permute.xlu0 0
    %770 = vperm.xlu0 %769, %v680
    %v771 = vpop.permute.xlu0 %770
    %774 = vset.pattern.permute.xlu0 0
    %775 = vperm.xlu0 %774, %v681
    %v776 = vpop.permute.xlu0 %775
    %v778 = vsub.f32 %v193, %v721
    %v779 = vsub.f32 %v198, %v726
    %v780 = vsub.f32 %v277, %v731
    %v781 = vsub.f32 %v282, %v736
    %v782 = vsub.f32 %v361, %v741
    %v783 = vsub.f32 %v366, %v746
    %v784 = vsub.f32 %v445, %v751
    %v785 = vsub.f32 %v450, %v756
    %v786 = vsub.f32 %v529, %v761
    %v787 = vsub.f32 %v534, %v766
    %v788 = vsub.f32 %v613, %v771
    %v789 = vsub.f32 %v618, %v776
    %v790 = vmul.f32 %v778, 1.442695
    %v791 = vpow.pop %v790
    %v792 = vmul.f32 %v779, 1.442695
    %v793 = vpow.pop %v792
    %v794 = vmul.f32 %v780, 1.442695
    %v795 = vpow.pop %v794
    %v796 = vmul.f32 %v781, 1.442695
    %v797 = vpow.pop %v796
    %v798 = vmul.f32 %v782, 1.442695
    %v799 = vpow.pop %v798
    %v800 = vmul.f32 %v783, 1.442695
    %v801 = vpow.pop %v800
    %v802 = vmul.f32 %v784, 1.442695
    %v803 = vpow.pop %v802
    %v804 = vmul.f32 %v785, 1.442695
    %v805 = vpow.pop %v804
    %v806 = vmul.f32 %v786, 1.442695
    %v807 = vpow.pop %v806
    %v808 = vmul.f32 %v787, 1.442695
    %v809 = vpow.pop %v808
    %v810 = vmul.f32 %v788, 1.442695
    %v811 = vpow.pop %v810
    %v812 = vmul.f32 %v789, 1.442695
    %v813 = vpow.pop %v812
    %v814 = vld [vmem:[#allocation3] sm:$0xff]
    %v815 = vld [vmem:[#allocation3 + $0x8] sm:$0xff]
    %v816 = vld [vmem:[#allocation3 + $0x10] sm:$0xff]
    %v817 = vld [vmem:[#allocation3 + $0x18] sm:$0xff]
    %v818 = vld [vmem:[#allocation3 + $0x20] sm:$0xff]
    %v819 = vld [vmem:[#allocation3 + $0x28] sm:$0xff]
    %v820 = vld [vmem:[#allocation3 + $0x30] sm:$0xff]
    %v821 = vld [vmem:[#allocation3 + $0x38] sm:$0xff]
    %v822 = vld [vmem:[#allocation3 + $0x40] sm:$0xff]
    %v823 = vld [vmem:[#allocation3 + $0x48] sm:$0xff]
    %v824 = vld [vmem:[#allocation3 + $0x50] sm:$0xff]
    %v825 = vld [vmem:[#allocation3 + $0x58] sm:$0xff]
    %v826 = vmul.f32 %v695, %v814
    %v827 = vmul.f32 %v697, %v815
    %v828 = vmul.f32 %v699, %v816
    %v829 = vmul.f32 %v701, %v817
    %v830 = vmul.f32 %v703, %v818
    %v831 = vmul.f32 %v705, %v819
    %v832 = vmul.f32 %v707, %v820
    %v833 = vmul.f32 %v709, %v821
    %v834 = vmul.f32 %v711, %v822
    %v835 = vmul.f32 %v713, %v823
    %v836 = vmul.f32 %v715, %v824
    %v837 = vmul.f32 %v717, %v825
    %v838 = vsel %vm633, %v791, 0.0
    %839 = vadd.xlane.f32.xlu0 %v838
    %v840 = vpop.xlane.xlu0 %839
    %v841 = vsel %vm633, %v793, 0.0
    %842 = vadd.xlane.f32.xlu0 %v841
    %v843 = vpop.xlane.xlu0 %842
    %v844 = vsel %vm633, %v795, 0.0
    %845 = vadd.xlane.f32.xlu0 %v844
    %v846 = vpop.xlane.xlu0 %845
    %v847 = vsel %vm633, %v797, 0.0
    %848 = vadd.xlane.f32.xlu0 %v847
    %v849 = vpop.xlane.xlu0 %848
    %v850 = vsel %vm633, %v799, 0.0
    %851 = vadd.xlane.f32.xlu0 %v850
    %v852 = vpop.xlane.xlu0 %851
    %v853 = vsel %vm633, %v801, 0.0
    %854 = vadd.xlane.f32.xlu0 %v853
    %v855 = vpop.xlane.xlu0 %854
    %v856 = vsel %vm633, %v803, 0.0
    %857 = vadd.xlane.f32.xlu0 %v856
    %v858 = vpop.xlane.xlu0 %857
    %v859 = vsel %vm633, %v805, 0.0
    %860 = vadd.xlane.f32.xlu0 %v859
    %v861 = vpop.xlane.xlu0 %860
    %v862 = vsel %vm633, %v807, 0.0
    %863 = vadd.xlane.f32.xlu0 %v862
    %v864 = vpop.xlane.xlu0 %863
    %v865 = vsel %vm633, %v809, 0.0
    %866 = vadd.xlane.f32.xlu0 %v865
    %v867 = vpop.xlane.xlu0 %866
    %v868 = vsel %vm633, %v811, 0.0
    %869 = vadd.xlane.f32.xlu0 %v868
    %v870 = vpop.xlane.xlu0 %869
    %v871 = vsel %vm633, %v813, 0.0
    %872 = vadd.xlane.f32.xlu0 %v871
    %v873 = vpop.xlane.xlu0 %872
    %v874 = vadd.f32 %v826, %v840
    %v875 = vadd.f32 %v827, %v843
    %v876 = vadd.f32 %v828, %v846
    %v877 = vadd.f32 %v829, %v849
    %v878 = vadd.f32 %v830, %v852
    %v879 = vadd.f32 %v831, %v855
    %v880 = vadd.f32 %v832, %v858
    %v881 = vadd.f32 %v833, %v861
    %v882 = vadd.f32 %v834, %v864
    %v883 = vadd.f32 %v835, %v867
    %v884 = vadd.f32 %v836, %v870
    %v885 = vadd.f32 %v837, %v873
    %vm886 = vcmask 7168
    %887 = vst.msk [vmem:[#allocation3] sm:$0xff] %vm886, %v874
    %888 = vst.msk [vmem:[#allocation3 + $0x8] sm:$0xff] %vm886, %v875
    %889 = vst.msk [vmem:[#allocation3 + $0x10] sm:$0xff] %vm886, %v876
    %890 = vst.msk [vmem:[#allocation3 + $0x18] sm:$0xff] %vm886, %v877
    %891 = vst.msk [vmem:[#allocation3 + $0x20] sm:$0xff] %vm886, %v878
    %892 = vst.msk [vmem:[#allocation3 + $0x28] sm:$0xff] %vm886, %v879
    %893 = vst.msk [vmem:[#allocation3 + $0x30] sm:$0xff] %vm886, %v880
    %894 = vst.msk [vmem:[#allocation3 + $0x38] sm:$0xff] %vm886, %v881
    %895 = vst.msk [vmem:[#allocation3 + $0x40] sm:$0xff] %vm886, %v882
    %896 = vst.msk [vmem:[#allocation3 + $0x48] sm:$0xff] %vm886, %v883
    %897 = vst.msk [vmem:[#allocation3 + $0x50] sm:$0xff] %vm886, %v884
    %898 = vst.msk [vmem:[#allocation3 + $0x58] sm:$0xff] %vm886, %v885
    %v899 = vld [vmem:[#allocation9] sm:$0xff]
    %v900 = vld [vmem:[#allocation9 + $0x8] sm:$0xff]
    %v901 = vld [vmem:[#allocation9 + $0x10] sm:$0xff]
    %v902 = vld [vmem:[#allocation9 + $0x18] sm:$0xff]
    %v903 = vld [vmem:[#allocation9 + $0x20] sm:$0xff]
    %v904 = vld [vmem:[#allocation9 + $0x28] sm:$0xff]
    %v906 = vsel %vm633, %v791, 0
    %v909 = vsel %vm633, %v793, 0
    %911 = vmatprep.subr.mxu0 0.0
    %912 = vmatpush1.msra.mxu0 %v899
    %913 = vmatprep.subr.mxu0 0.0
    %914 = vmatpush1.msra.mxu0 0.0
    %915 = vmatprep.subr.mxu0 0.0
    %916 = vmatpush1.msra.mxu0 0.0
    %917 = vmatprep.subr.mxu0 0.0
    %918 = vmatpush1.msra.mxu0 0.0
    %919 = vmatprep.subr.mxu0 0.0
    %920 = vmatpush1.msra.mxu0 0.0
    %921 = vmatprep.subr.mxu0 0.0
    %922 = vmatpush1.msra.mxu0 0.0
    %923 = vmatprep.subr.mxu0 0.0
    %924 = vmatpush1.msra.mxu0 0.0
    %925 = vmatprep.subr.mxu0 0.0
    %926 = vmatpush1.msra.mxu0 0.0
    %927 = vmatprep.subr.mxu0 0.0
    %928 = vmatpush1.msra.mxu0 0.0
    %929 = vmatprep.subr.mxu0 0.0
    %930 = vmatpush1.msra.mxu0 0.0
    %931 = vmatprep.subr.mxu0 0.0
    %932 = vmatpush1.msra.mxu0 0.0
    %933 = vmatprep.subr.mxu0 0.0
    %934 = vmatpush1.msra.mxu0 0.0
    %935 = vmatprep.subr.mxu0 0.0
    %936 = vmatpush1.msra.mxu0 0.0
    %937 = vmatprep.subr.mxu0 0.0
    %938 = vmatpush1.msra.mxu0 0.0
    %939 = vmatprep.subr.mxu0 0.0
    %940 = vmatpush1.msra.mxu0 0.0
    %941 = vmatprep.subr.mxu0 0.0
    %942 = vmatpush1.msra.mxu0 0.0
    %943 = vmatprep.subr.mxu0 0.0
    %944 = vmatpush1.msra.mxu0 0.0
    %945 = vmatprep.subr.mxu0 0.0
    %946 = vmatpush1.msra.mxu0 0.0
    %947 = vmatprep.subr.mxu0 0.0
    %948 = vmatpush1.msra.mxu0 0.0
    %949 = vmatprep.subr.mxu0 0.0
    %950 = vmatpush1.msra.mxu0 0.0
    %951 = vmatprep.subr.mxu0 0.0
    %952 = vmatpush1.msra.mxu0 0.0
    %953 = vmatprep.subr.mxu0 0.0
    %954 = vmatpush1.msra.mxu0 0.0
    %955 = vmatprep.subr.mxu0 0.0
    %956 = vmatpush1.msra.mxu0 0.0
    %957 = vmatprep.subr.mxu0 0.0
    %958 = vmatpush1.msra.mxu0 0.0
    %959 = vmatprep.subr.mxu0 0.0
    %960 = vmatpush1.msra.mxu0 0.0
    %961 = vmatprep.subr.mxu0 0.0
    %962 = vmatpush1.msra.mxu0 0.0
    %963 = vmatprep.subr.mxu0 0.0
    %964 = vmatpush1.msra.mxu0 0.0
    %965 = vmatprep.subr.mxu0 0.0
    %966 = vmatpush1.msra.mxu0 0.0
    %967 = vmatprep.subr.mxu0 0.0
    %968 = vmatpush1.msra.mxu0 0.0
    %969 = vmatprep.subr.mxu0 0.0
    %970 = vmatpush1.msra.mxu0 0.0
    %971 = vmatprep.subr.mxu0 0.0
    %972 = vmatpush1.msra.mxu0 0.0
    %973 = vmatprep.subr.mxu0 0.0
    %974 = vmatpush1.msra.mxu0 0.0
    %975 = vmatprep.mubr.f32.mxu0 0.0
    %976 = vmatmul.mubr.f32.gmra.mrb[0].mxu0 %v906
    %v977 = vpop.f32.mrb[0].mxu0
    %v978 = vadd.f32 0.0, %v977
    %v979 = vpop.f32.mrb[0].mxu0
    %980 = vmatprep.mubr.f32.mxu0 0.0
    %981 = vmatmul.mubr.f32.gmra.mrb[0].mxu0 %v909
    %v982 = vpop.f32.mrb[0].mxu0
    %v983 = vadd.f32 0.0, %v982
    %v984 = vpop.f32.mrb[0].mxu0
    %985 = vdwg.mxu0
    %v987 = vsel %vm633, %v795, 0
    %v990 = vsel %vm633, %v797, 0
    %992 = vmatprep.subr.mxu0 0.0
    %993 = vmatpush1.msra.mxu0 %v900
    %994 = vmatprep.subr.mxu0 0.0
    %995 = vmatpush1.msra.mxu0 0.0
    %996 = vmatprep.subr.mxu0 0.0
    %997 = vmatpush1.msra.mxu0 0.0
    %998 = vmatprep.subr.mxu0 0.0
    %999 = vmatpush1.msra.mxu0 0.0
    %1000 = vmatprep.subr.mxu0 0.0
    %1001 = vmatpush1.msra.mxu0 0.0
    %1002 = vmatprep.subr.mxu0 0.0
    %1003 = vmatpush1.msra.mxu0 0.0
    %1004 = vmatprep.subr.mxu0 0.0
    %1005 = vmatpush1.msra.mxu0 0.0
    %1006 = vmatprep.subr.mxu0 0.0
    %1007 = vmatpush1.msra.mxu0 0.0
    %1008 = vmatprep.subr.mxu0 0.0
    %1009 = vmatpush1.msra.mxu0 0.0
    %1010 = vmatprep.subr.mxu0 0.0
    %1011 = vmatpush1.msra.mxu0 0.0
    %1012 = vmatprep.subr.mxu0 0.0
    %1013 = vmatpush1.msra.mxu0 0.0
    %1014 = vmatprep.subr.mxu0 0.0
    %1015 = vmatpush1.msra.mxu0 0.0
    %1016 = vmatprep.subr.mxu0 0.0
    %1017 = vmatpush1.msra.mxu0 0.0
    %1018 = vmatprep.subr.mxu0 0.0
    %1019 = vmatpush1.msra.mxu0 0.0
    %1020 = vmatprep.subr.mxu0 0.0
    %1021 = vmatpush1.msra.mxu0 0.0
    %1022 = vmatprep.subr.mxu0 0.0
    %1023 = vmatpush1.msra.mxu0 0.0
    %1024 = vmatprep.subr.mxu0 0.0
    %1025 = vmatpush1.msra.mxu0 0.0
    %1026 = vmatprep.subr.mxu0 0.0
    %1027 = vmatpush1.msra.mxu0 0.0
    %1028 = vmatprep.subr.mxu0 0.0
    %1029 = vmatpush1.msra.mxu0 0.0
    %1030 = vmatprep.subr.mxu0 0.0
    %1031 = vmatpush1.msra.mxu0 0.0
    %1032 = vmatprep.subr.mxu0 0.0
    %1033 = vmatpush1.msra.mxu0 0.0
    %1034 = vmatprep.subr.mxu0 0.0
    %1035 = vmatpush1.msra.mxu0 0.0
    %1036 = vmatprep.subr.mxu0 0.0
    %1037 = vmatpush1.msra.mxu0 0.0
    %1038 = vmatprep.subr.mxu0 0.0
    %1039 = vmatpush1.msra.mxu0 0.0
    %1040 = vmatprep.subr.mxu0 0.0
    %1041 = vmatpush1.msra.mxu0 0.0
    %1042 = vmatprep.subr.mxu0 0.0
    %1043 = vmatpush1.msra.mxu0 0.0
    %1044 = vmatprep.subr.mxu0 0.0
    %1045 = vmatpush1.msra.mxu0 0.0
    %1046 = vmatprep.subr.mxu0 0.0
    %1047 = vmatpush1.msra.mxu0 0.0
    %1048 = vmatprep.subr.mxu0 0.0
    %1049 = vmatpush1.msra.mxu0 0.0
    %1050 = vmatprep.subr.mxu0 0.0
    %1051 = vmatpush1.msra.mxu0 0.0
    %1052 = vmatprep.subr.mxu0 0.0
    %1053 = vmatpush1.msra.mxu0 0.0
    %1054 = vmatprep.subr.mxu0 0.0
    %1055 = vmatpush1.msra.mxu0 0.0
    %1056 = vmatprep.mubr.f32.mxu0 0.0
    %1057 = vmatmul.mubr.f32.gmra.mrb[0].mxu0 %v987
    %v1058 = vpop.f32.mrb[0].mxu0
    %v1059 = vadd.f32 0.0, %v1058
    %v1060 = vpop.f32.mrb[0].mxu0
    %1061 = vmatprep.mubr.f32.mxu0 0.0
    %1062 = vmatmul.mubr.f32.gmra.mrb[0].mxu0 %v990
    %v1063 = vpop.f32.mrb[0].mxu0
    %v1064 = vadd.f32 0.0, %v1063
    %v1065 = vpop.f32.mrb[0].mxu0
    %1066 = vdwg.mxu0
    %v1068 = vsel %vm633, %v799, 0
    %v1071 = vsel %vm633, %v801, 0
    %1073 = vmatprep.subr.mxu0 0.0
    %1074 = vmatpush1.msra.mxu0 %v901
    %1075 = vmatprep.subr.mxu0 0.0
    %1076 = vmatpush1.msra.mxu0 0.0
    %1077 = vmatprep.subr.mxu0 0.0
    %1078 = vmatpush1.msra.mxu0 0.0
    %1079 = vmatprep.subr.mxu0 0.0
    %1080 = vmatpush1.msra.mxu0 0.0
    %1081 = vmatprep.subr.mxu0 0.0
    %1082 = vmatpush1.msra.mxu0 0.0
    %1083 = vmatprep.subr.mxu0 0.0
    %1084 = vmatpush1.msra.mxu0 0.0
    %1085 = vmatprep.subr.mxu0 0.0
    %1086 = vmatpush1.msra.mxu0 0.0
    %1087 = vmatprep.subr.mxu0 0.0
    %1088 = vmatpush1.msra.mxu0 0.0
    %1089 = vmatprep.subr.mxu0 0.0
    %1090 = vmatpush1.msra.mxu0 0.0
    %1091 = vmatprep.subr.mxu0 0.0
    %1092 = vmatpush1.msra.mxu0 0.0
    %1093 = vmatprep.subr.mxu0 0.0
    %1094 = vmatpush1.msra.mxu0 0.0
    %1095 = vmatprep.subr.mxu0 0.0
    %1096 = vmatpush1.msra.mxu0 0.0
    %1097 = vmatprep.subr.mxu0 0.0
    %1098 = vmatpush1.msra.mxu0 0.0
    %1099 = vmatprep.subr.mxu0 0.0
    %1100 = vmatpush1.msra.mxu0 0.0
    %1101 = vmatprep.subr.mxu0 0.0
    %1102 = vmatpush1.msra.mxu0 0.0
    %1103 = vmatprep.subr.mxu0 0.0
    %1104 = vmatpush1.msra.mxu0 0.0
    %1105 = vmatprep.subr.mxu0 0.0
    %1106 = vmatpush1.msra.mxu0 0.0
    %1107 = vmatprep.subr.mxu0 0.0
    %1108 = vmatpush1.msra.mxu0 0.0
    %1109 = vmatprep.subr.mxu0 0.0
    %1110 = vmatpush1.msra.mxu0 0.0
    %1111 = vmatprep.subr.mxu0 0.0
    %1112 = vmatpush1.msra.mxu0 0.0
    %1113 = vmatprep.subr.mxu0 0.0
    %1114 = vmatpush1.msra.mxu0 0.0
    %1115 = vmatprep.subr.mxu0 0.0
    %1116 = vmatpush1.msra.mxu0 0.0
    %1117 = vmatprep.subr.mxu0 0.0
    %1118 = vmatpush1.msra.mxu0 0.0
    %1119 = vmatprep.subr.mxu0 0.0
    %1120 = vmatpush1.msra.mxu0 0.0
    %1121 = vmatprep.subr.mxu0 0.0
    %1122 = vmatpush1.msra.mxu0 0.0
    %1123 = vmatprep.subr.mxu0 0.0
    %1124 = vmatpush1.msra.mxu0 0.0
    %1125 = vmatprep.subr.mxu0 0.0
    %1126 = vmatpush1.msra.mxu0 0.0
    %1127 = vmatprep.subr.mxu0 0.0
    %1128 = vmatpush1.msra.mxu0 0.0
    %1129 = vmatprep.subr.mxu0 0.0
    %1130 = vmatpush1.msra.mxu0 0.0
    %1131 = vmatprep.subr.mxu0 0.0
    %1132 = vmatpush1.msra.mxu0 0.0
    %1133 = vmatprep.subr.mxu0 0.0
    %1134 = vmatpush1.msra.mxu0 0.0
    %1135 = vmatprep.subr.mxu0 0.0
    %1136 = vmatpush1.msra.mxu0 0.0
    %1137 = vmatprep.mubr.f32.mxu0 0.0
    %1138 = vmatmul.mubr.f32.gmra.mrb[0].mxu0 %v1068
    %v1139 = vpop.f32.mrb[0].mxu0
    %v1140 = vadd.f32 0.0, %v1139
    %v1141 = vpop.f32.mrb[0].mxu0
    %1142 = vmatprep.mubr.f32.mxu0 0.0
    %1143 = vmatmul.mubr.f32.gmra.mrb[0].mxu0 %v1071
    %v1144 = vpop.f32.mrb[0].mxu0
    %v1145 = vadd.f32 0.0, %v1144
    %v1146 = vpop.f32.mrb[0].mxu0
    %1147 = vdwg.mxu0
    %v1149 = vsel %vm633, %v803, 0
    %v1152 = vsel %vm633, %v805, 0
    %1154 = vmatprep.subr.mxu0 0.0
    %1155 = vmatpush1.msra.mxu0 %v902
    %1156 = vmatprep.subr.mxu0 0.0
    %1157 = vmatpush1.msra.mxu0 0.0
    %1158 = vmatprep.subr.mxu0 0.0
    %1159 = vmatpush1.msra.mxu0 0.0
    %1160 = vmatprep.subr.mxu0 0.0
    %1161 = vmatpush1.msra.mxu0 0.0
    %1162 = vmatprep.subr.mxu0 0.0
    %1163 = vmatpush1.msra.mxu0 0.0
    %1164 = vmatprep.subr.mxu0 0.0
    %1165 = vmatpush1.msra.mxu0 0.0
    %1166 = vmatprep.subr.mxu0 0.0
    %1167 = vmatpush1.msra.mxu0 0.0
    %1168 = vmatprep.subr.mxu0 0.0
    %1169 = vmatpush1.msra.mxu0 0.0
    %1170 = vmatprep.subr.mxu0 0.0
    %1171 = vmatpush1.msra.mxu0 0.0
    %1172 = vmatprep.subr.mxu0 0.0
    %1173 = vmatpush1.msra.mxu0 0.0
    %1174 = vmatprep.subr.mxu0 0.0
    %1175 = vmatpush1.msra.mxu0 0.0
    %1176 = vmatprep.subr.mxu0 0.0
    %1177 = vmatpush1.msra.mxu0 0.0
    %1178 = vmatprep.subr.mxu0 0.0
    %1179 = vmatpush1.msra.mxu0 0.0
    %1180 = vmatprep.subr.mxu0 0.0
    %1181 = vmatpush1.msra.mxu0 0.0
    %1182 = vmatprep.subr.mxu0 0.0
    %1183 = vmatpush1.msra.mxu0 0.0
    %1184 = vmatprep.subr.mxu0 0.0
    %1185 = vmatpush1.msra.mxu0 0.0
    %1186 = vmatprep.subr.mxu0 0.0
    %1187 = vmatpush1.msra.mxu0 0.0
    %1188 = vmatprep.subr.mxu0 0.0
    %1189 = vmatpush1.msra.mxu0 0.0
    %1190 = vmatprep.subr.mxu0 0.0
    %1191 = vmatpush1.msra.mxu0 0.0
    %1192 = vmatprep.subr.mxu0 0.0
    %1193 = vmatpush1.msra.mxu0 0.0
    %1194 = vmatprep.subr.mxu0 0.0
    %1195 = vmatpush1.msra.mxu0 0.0
    %1196 = vmatprep.subr.mxu0 0.0
    %1197 = vmatpush1.msra.mxu0 0.0
    %1198 = vmatprep.subr.mxu0 0.0
    %1199 = vmatpush1.msra.mxu0 0.0
    %1200 = vmatprep.subr.mxu0 0.0
    %1201 = vmatpush1.msra.mxu0 0.0
    %1202 = vmatprep.subr.mxu0 0.0
    %1203 = vmatpush1.msra.mxu0 0.0
    %1204 = vmatprep.subr.mxu0 0.0
    %1205 = vmatpush1.msra.mxu0 0.0
    %1206 = vmatprep.subr.mxu0 0.0
    %1207 = vmatpush1.msra.mxu0 0.0
    %1208 = vmatprep.subr.mxu0 0.0
    %1209 = vmatpush1.msra.mxu0 0.0
    %1210 = vmatprep.subr.mxu0 0.0
    %1211 = vmatpush1.msra.mxu0 0.0
    %1212 = vmatprep.subr.mxu0 0.0
    %1213 = vmatpush1.msra.mxu0 0.0
    %1214 = vmatprep.subr.mxu0 0.0
    %1215 = vmatpush1.msra.mxu0 0.0
    %1216 = vmatprep.subr.mxu0 0.0
    %1217 = vmatpush1.msra.mxu0 0.0
    %1218 = vmatprep.mubr.f32.mxu0 0.0
    %1219 = vmatmul.mubr.f32.gmra.mrb[0].mxu0 %v1149
    %v1220 = vpop.f32.mrb[0].mxu0
    %v1221 = vadd.f32 0.0, %v1220
    %v1222 = vpop.f32.mrb[0].mxu0
    %1223 = vmatprep.mubr.f32.mxu0 0.0
    %1224 = vmatmul.mubr.f32.gmra.mrb[0].mxu0 %v1152
    %v1225 = vpop.f32.mrb[0].mxu0
    %v1226 = vadd.f32 0.0, %v1225
    %v1227 = vpop.f32.mrb[0].mxu0
    %1228 = vdwg.mxu0
    %v1230 = vsel %vm633, %v807, 0
    %v1233 = vsel %vm633, %v809, 0
    %1235 = vmatprep.subr.mxu0 0.0
    %1236 = vmatpush1.msra.mxu0 %v903
    %1237 = vmatprep.subr.mxu0 0.0
    %1238 = vmatpush1.msra.mxu0 0.0
    %1239 = vmatprep.subr.mxu0 0.0
    %1240 = vmatpush1.msra.mxu0 0.0
    %1241 = vmatprep.subr.mxu0 0.0
    %1242 = vmatpush1.msra.mxu0 0.0
    %1243 = vmatprep.subr.mxu0 0.0
    %1244 = vmatpush1.msra.mxu0 0.0
    %1245 = vmatprep.subr.mxu0 0.0
    %1246 = vmatpush1.msra.mxu0 0.0
    %1247 = vmatprep.subr.mxu0 0.0
    %1248 = vmatpush1.msra.mxu0 0.0
    %1249 = vmatprep.subr.mxu0 0.0
    %1250 = vmatpush1.msra.mxu0 0.0
    %1251 = vmatprep.subr.mxu0 0.0
    %1252 = vmatpush1.msra.mxu0 0.0
    %1253 = vmatprep.subr.mxu0 0.0
    %1254 = vmatpush1.msra.mxu0 0.0
    %1255 = vmatprep.subr.mxu0 0.0
    %1256 = vmatpush1.msra.mxu0 0.0
    %1257 = vmatprep.subr.mxu0 0.0
    %1258 = vmatpush1.msra.mxu0 0.0
    %1259 = vmatprep.subr.mxu0 0.0
    %1260 = vmatpush1.msra.mxu0 0.0
    %1261 = vmatprep.subr.mxu0 0.0
    %1262 = vmatpush1.msra.mxu0 0.0
    %1263 = vmatprep.subr.mxu0 0.0
    %1264 = vmatpush1.msra.mxu0 0.0
    %1265 = vmatprep.subr.mxu0 0.0
    %1266 = vmatpush1.msra.mxu0 0.0
    %1267 = vmatprep.subr.mxu0 0.0
    %1268 = vmatpush1.msra.mxu0 0.0
    %1269 = vmatprep.subr.mxu0 0.0
    %1270 = vmatpush1.msra.mxu0 0.0
    %1271 = vmatprep.subr.mxu0 0.0
    %1272 = vmatpush1.msra.mxu0 0.0
    %1273 = vmatprep.subr.mxu0 0.0
    %1274 = vmatpush1.msra.mxu0 0.0
    %1275 = vmatprep.subr.mxu0 0.0
    %1276 = vmatpush1.msra.mxu0 0.0
    %1277 = vmatprep.subr.mxu0 0.0
    %1278 = vmatpush1.msra.mxu0 0.0
    %1279 = vmatprep.subr.mxu0 0.0
    %1280 = vmatpush1.msra.mxu0 0.0
    %1281 = vmatprep.subr.mxu0 0.0
    %1282 = vmatpush1.msra.mxu0 0.0
    %1283 = vmatprep.subr.mxu0 0.0
    %1284 = vmatpush1.msra.mxu0 0.0
    %1285 = vmatprep.subr.mxu0 0.0
    %1286 = vmatpush1.msra.mxu0 0.0
    %1287 = vmatprep.subr.mxu0 0.0
    %1288 = vmatpush1.msra.mxu0 0.0
    %1289 = vmatprep.subr.mxu0 0.0
    %1290 = vmatpush1.msra.mxu0 0.0
    %1291 = vmatprep.subr.mxu0 0.0
    %1292 = vmatpush1.msra.mxu0 0.0
    %1293 = vmatprep.subr.mxu0 0.0
    %1294 = vmatpush1.msra.mxu0 0.0
    %1295 = vmatprep.subr.mxu0 0.0
    %1296 = vmatpush1.msra.mxu0 0.0
    %1297 = vmatprep.subr.mxu0 0.0
    %1298 = vmatpush1.msra.mxu0 0.0
    %1299 = vmatprep.mubr.f32.mxu0 0.0
    %1300 = vmatmul.mubr.f32.gmra.mrb[0].mxu0 %v1230
    %v1301 = vpop.f32.mrb[0].mxu0
    %v1302 = vadd.f32 0.0, %v1301
    %v1303 = vpop.f32.mrb[0].mxu0
    %1304 = vmatprep.mubr.f32.mxu0 0.0
    %1305 = vmatmul.mubr.f32.gmra.mrb[0].mxu0 %v1233
    %v1306 = vpop.f32.mrb[0].mxu0
    %v1307 = vadd.f32 0.0, %v1306
    %v1308 = vpop.f32.mrb[0].mxu0
    %1309 = vdwg.mxu0
    %v1311 = vsel %vm633, %v811, 0
    %v1314 = vsel %vm633, %v813, 0
    %1316 = vmatprep.subr.mxu0 0.0
    %1317 = vmatpush1.msra.mxu0 %v904
    %1318 = vmatprep.subr.mxu0 0.0
    %1319 = vmatpush1.msra.mxu0 0.0
    %1320 = vmatprep.subr.mxu0 0.0
    %1321 = vmatpush1.msra.mxu0 0.0
    %1322 = vmatprep.subr.mxu0 0.0
    %1323 = vmatpush1.msra.mxu0 0.0
    %1324 = vmatprep.subr.mxu0 0.0
    %1325 = vmatpush1.msra.mxu0 0.0
    %1326 = vmatprep.subr.mxu0 0.0
    %1327 = vmatpush1.msra.mxu0 0.0
    %1328 = vmatprep.subr.mxu0 0.0
    %1329 = vmatpush1.msra.mxu0 0.0
    %1330 = vmatprep.subr.mxu0 0.0
    %1331 = vmatpush1.msra.mxu0 0.0
    %1332 = vmatprep.subr.mxu0 0.0
    %1333 = vmatpush1.msra.mxu0 0.0
    %1334 = vmatprep.subr.mxu0 0.0
    %1335 = vmatpush1.msra.mxu0 0.0
    %1336 = vmatprep.subr.mxu0 0.0
    %1337 = vmatpush1.msra.mxu0 0.0
    %1338 = vmatprep.subr.mxu0 0.0
    %1339 = vmatpush1.msra.mxu0 0.0
    %1340 = vmatprep.subr.mxu0 0.0
    %1341 = vmatpush1.msra.mxu0 0.0
    %1342 = vmatprep.subr.mxu0 0.0
    %1343 = vmatpush1.msra.mxu0 0.0
    %1344 = vmatprep.subr.mxu0 0.0
    %1345 = vmatpush1.msra.mxu0 0.0
    %1346 = vmatprep.subr.mxu0 0.0
    %1347 = vmatpush1.msra.mxu0 0.0
    %1348 = vmatprep.subr.mxu0 0.0
    %1349 = vmatpush1.msra.mxu0 0.0
    %1350 = vmatprep.subr.mxu0 0.0
    %1351 = vmatpush1.msra.mxu0 0.0
    %1352 = vmatprep.subr.mxu0 0.0
    %1353 = vmatpush1.msra.mxu0 0.0
    %1354 = vmatprep.subr.mxu0 0.0
    %1355 = vmatpush1.msra.mxu0 0.0
    %1356 = vmatprep.subr.mxu0 0.0
    %1357 = vmatpush1.msra.mxu0 0.0
    %1358 = vmatprep.subr.mxu0 0.0
    %1359 = vmatpush1.msra.mxu0 0.0
    %1360 = vmatprep.subr.mxu0 0.0
    %1361 = vmatpush1.msra.mxu0 0.0
    %1362 = vmatprep.subr.mxu0 0.0
    %1363 = vmatpush1.msra.mxu0 0.0
    %1364 = vmatprep.subr.mxu0 0.0
    %1365 = vmatpush1.msra.mxu0 0.0
    %1366 = vmatprep.subr.mxu0 0.0
    %1367 = vmatpush1.msra.mxu0 0.0
    %1368 = vmatprep.subr.mxu0 0.0
    %1369 = vmatpush1.msra.mxu0 0.0
    %1370 = vmatprep.subr.mxu0 0.0
    %1371 = vmatpush1.msra.mxu0 0.0
    %1372 = vmatprep.subr.mxu0 0.0
    %1373 = vmatpush1.msra.mxu0 0.0
    %1374 = vmatprep.subr.mxu0 0.0
    %1375 = vmatpush1.msra.mxu0 0.0
    %1376 = vmatprep.subr.mxu0 0.0
    %1377 = vmatpush1.msra.mxu0 0.0
    %1378 = vmatprep.subr.mxu0 0.0
    %1379 = vmatpush1.msra.mxu0 0.0
    %1380 = vmatprep.mubr.f32.mxu0 0.0
    %1381 = vmatmul.mubr.f32.gmra.mrb[0].mxu0 %v1311
    %v1382 = vpop.f32.mrb[0].mxu0
    %v1383 = vadd.f32 0.0, %v1382
    %v1384 = vpop.f32.mrb[0].mxu0
    %1385 = vmatprep.mubr.f32.mxu0 0.0
    %1386 = vmatmul.mubr.f32.gmra.mrb[0].mxu0 %v1314
    %v1387 = vpop.f32.mrb[0].mxu0
    %v1388 = vadd.f32 0.0, %v1387
    %v1389 = vpop.f32.mrb[0].mxu0
    %1390 = vdwg.mxu0
    %v1391 = vld [vmem:[#allocation10] sm:$0xff]
    %v1392 = vld [vmem:[#allocation10 + $0x8] sm:$0xff]
    %v1393 = vld [vmem:[#allocation10 + $0x10] sm:$0xff]
    %v1394 = vld [vmem:[#allocation10 + $0x18] sm:$0xff]
    %v1395 = vld [vmem:[#allocation10 + $0x20] sm:$0xff]
    %v1396 = vld [vmem:[#allocation10 + $0x28] sm:$0xff]
    %v1397 = vld [vmem:[#allocation10 + $0x30] sm:$0xff]
    %v1398 = vld [vmem:[#allocation10 + $0x38] sm:$0xff]
    %v1399 = vld [vmem:[#allocation10 + $0x40] sm:$0xff]
    %v1400 = vld [vmem:[#allocation10 + $0x48] sm:$0xff]
    %v1401 = vld [vmem:[#allocation10 + $0x50] sm:$0xff]
    %v1402 = vld [vmem:[#allocation10 + $0x58] sm:$0xff]
    %1404 = vset.pattern.permute.xlu0 0
    %1405 = vperm.xlu0 %1404, %v695
    %v1406 = vpop.permute.xlu0 %1405
    %1409 = vset.pattern.permute.xlu0 0
    %1410 = vperm.xlu0 %1409, %v697
    %v1411 = vpop.permute.xlu0 %1410
    %1414 = vset.pattern.permute.xlu0 0
    %1415 = vperm.xlu0 %1414, %v699
    %v1416 = vpop.permute.xlu0 %1415
    %1419 = vset.pattern.permute.xlu0 0
    %1420 = vperm.xlu0 %1419, %v701
    %v1421 = vpop.permute.xlu0 %1420
    %1424 = vset.pattern.permute.xlu0 0
    %1425 = vperm.xlu0 %1424, %v703
    %v1426 = vpop.permute.xlu0 %1425
    %1429 = vset.pattern.permute.xlu0 0
    %1430 = vperm.xlu0 %1429, %v705
    %v1431 = vpop.permute.xlu0 %1430
    %1434 = vset.pattern.permute.xlu0 0
    %1435 = vperm.xlu0 %1434, %v707
    %v1436 = vpop.permute.xlu0 %1435
    %1439 = vset.pattern.permute.xlu0 0
    %1440 = vperm.xlu0 %1439, %v709
    %v1441 = vpop.permute.xlu0 %1440
    %1444 = vset.pattern.permute.xlu0 0
    %1445 = vperm.xlu0 %1444, %v711
    %v1446 = vpop.permute.xlu0 %1445
    %1449 = vset.pattern.permute.xlu0 0
    %1450 = vperm.xlu0 %1449, %v713
    %v1451 = vpop.permute.xlu0 %1450
    %1454 = vset.pattern.permute.xlu0 0
    %1455 = vperm.xlu0 %1454, %v715
    %v1456 = vpop.permute.xlu0 %1455
    %1459 = vset.pattern.permute.xlu0 0
    %1460 = vperm.xlu0 %1459, %v717
    %v1461 = vpop.permute.xlu0 %1460
    %v1463 = vmul.f32 %v1406, %v1391
    %v1464 = vmul.f32 %v1411, %v1392
    %v1465 = vmul.f32 %v1416, %v1393
    %v1466 = vmul.f32 %v1421, %v1394
    %v1467 = vmul.f32 %v1426, %v1395
    %v1468 = vmul.f32 %v1431, %v1396
    %v1469 = vmul.f32 %v1436, %v1397
    %v1470 = vmul.f32 %v1441, %v1398
    %v1471 = vmul.f32 %v1446, %v1399
    %v1472 = vmul.f32 %v1451, %v1400
    %v1473 = vmul.f32 %v1456, %v1401
    %v1474 = vmul.f32 %v1461, %v1402
    %v1475 = vadd.f32 %v1463, %v978
    %v1476 = vadd.f32 %v1464, %v983
    %v1477 = vadd.f32 %v1465, %v1059
    %v1478 = vadd.f32 %v1466, %v1064
    %v1479 = vadd.f32 %v1467, %v1140
    %v1480 = vadd.f32 %v1468, %v1145
    %v1481 = vadd.f32 %v1469, %v1221
    %v1482 = vadd.f32 %v1470, %v1226
    %v1483 = vadd.f32 %v1471, %v1302
    %v1484 = vadd.f32 %v1472, %v1307
    %v1485 = vadd.f32 %v1473, %v1383
    %v1486 = vadd.f32 %v1474, %v1388
    %1487 = vst.msk [vmem:[#allocation10] sm:$0xff] %vm116, %v1475
    %1488 = vst.msk [vmem:[#allocation10 + $0x8] sm:$0xff] %vm116, %v1476
    %1489 = vst.msk [vmem:[#allocation10 + $0x10] sm:$0xff] %vm116, %v1477
    %1490 = vst.msk [vmem:[#allocation10 + $0x18] sm:$0xff] %vm116, %v1478
    %1491 = vst.msk [vmem:[#allocation10 + $0x20] sm:$0xff] %vm116, %v1479
    %1492 = vst.msk [vmem:[#allocation10 + $0x28] sm:$0xff] %vm116, %v1480
    %1493 = vst.msk [vmem:[#allocation10 + $0x30] sm:$0xff] %vm116, %v1481
    %1494 = vst.msk [vmem:[#allocation10 + $0x38] sm:$0xff] %vm116, %v1482
    %1495 = vst.msk [vmem:[#allocation10 + $0x40] sm:$0xff] %vm116, %v1483
    %1496 = vst.msk [vmem:[#allocation10 + $0x48] sm:$0xff] %vm116, %v1484
    %1497 = vst.msk [vmem:[#allocation10 + $0x50] sm:$0xff] %vm116, %v1485
    %1498 = vst.msk [vmem:[#allocation10 + $0x58] sm:$0xff] %vm116, %v1486
    %1499 = vst.msk [vmem:[#allocation2] sm:$0xff] %vm886, %v670
    %1500 = vst.msk [vmem:[#allocation2 + $0x8] sm:$0xff] %vm886, %v671
    %1501 = vst.msk [vmem:[#allocation2 + $0x10] sm:$0xff] %vm886, %v672
    %1502 = vst.msk [vmem:[#allocation2 + $0x18] sm:$0xff] %vm886, %v673
    %1503 = vst.msk [vmem:[#allocation2 + $0x20] sm:$0xff] %vm886, %v674
    %1504 = vst.msk [vmem:[#allocation2 + $0x28] sm:$0xff] %vm886, %v675
    %1505 = vst.msk [vmem:[#allocation2 + $0x30] sm:$0xff] %vm886, %v676
    %1506 = vst.msk [vmem:[#allocation2 + $0x38] sm:$0xff] %vm886, %v677
    %1507 = vst.msk [vmem:[#allocation2 + $0x40] sm:$0xff] %vm886, %v678
    %1508 = vst.msk [vmem:[#allocation2 + $0x48] sm:$0xff] %vm886, %v679
    %1509 = vst.msk [vmem:[#allocation2 + $0x50] sm:$0xff] %vm886, %v680
    %1510 = vst.msk [vmem:[#allocation2 + $0x58] sm:$0xff] %vm886, %v681
    // Predicated region
    $region30: #{tpu_custom_call.1} parent=1 // pred_check
      %p1511 = pneg %p56
    $region31: #{tpu_custom_call.1} parent=1 // pred_check_branch
      %1513 = sbr.rel (%p1511) target = $region33
    $region32: #{tpu_custom_call.1} parent=1 // pred_region
      %v1514 = vld [vmem:[#allocation3] sm:$0xff]
      %v1515 = vld [vmem:[#allocation3 + $0x8] sm:$0xff]
      %v1516 = vld [vmem:[#allocation3 + $0x10] sm:$0xff]
      %v1517 = vld [vmem:[#allocation3 + $0x18] sm:$0xff]
      %v1518 = vld [vmem:[#allocation3 + $0x20] sm:$0xff]
      %v1519 = vld [vmem:[#allocation3 + $0x28] sm:$0xff]
      %v1520 = vld [vmem:[#allocation3 + $0x30] sm:$0xff]
      %v1521 = vld [vmem:[#allocation3 + $0x38] sm:$0xff]
      %v1522 = vld [vmem:[#allocation3 + $0x40] sm:$0xff]
      %v1523 = vld [vmem:[#allocation3 + $0x48] sm:$0xff]
      %v1524 = vld [vmem:[#allocation3 + $0x50] sm:$0xff]
      %v1525 = vld [vmem:[#allocation3 + $0x58] sm:$0xff]
      %v1526 = vrcp.pop %v1514
      %v1527 = vrcp.pop %v1515
      %v1528 = vrcp.pop %v1516
      %v1529 = vrcp.pop %v1517
      %v1530 = vrcp.pop %v1518
      %v1531 = vrcp.pop %v1519
      %v1532 = vrcp.pop %v1520
      %v1533 = vrcp.pop %v1521
      %v1534 = vrcp.pop %v1522
      %v1535 = vrcp.pop %v1523
      %v1536 = vrcp.pop %v1524
      %v1537 = vrcp.pop %v1525
      %v1538 = vld [vmem:[#allocation10] sm:$0xff]
      %v1539 = vld [vmem:[#allocation10 + $0x8] sm:$0xff]
      %v1540 = vld [vmem:[#allocation10 + $0x10] sm:$0xff]
      %v1541 = vld [vmem:[#allocation10 + $0x18] sm:$0xff]
      %v1542 = vld [vmem:[#allocation10 + $0x20] sm:$0xff]
      %v1543 = vld [vmem:[#allocation10 + $0x28] sm:$0xff]
      %v1544 = vld [vmem:[#allocation10 + $0x30] sm:$0xff]
      %v1545 = vld [vmem:[#allocation10 + $0x38] sm:$0xff]
      %v1546 = vld [vmem:[#allocation10 + $0x40] sm:$0xff]
      %v1547 = vld [vmem:[#allocation10 + $0x48] sm:$0xff]
      %v1548 = vld [vmem:[#allocation10 + $0x50] sm:$0xff]
      %v1549 = vld [vmem:[#allocation10 + $0x58] sm:$0xff]
      %1551 = vset.pattern.permute.xlu0 0
      %1552 = vperm.xlu0 %1551, %v1526
      %v1553 = vpop.permute.xlu0 %1552
      %1556 = vset.pattern.permute.xlu0 0
      %1557 = vperm.xlu0 %1556, %v1527
      %v1558 = vpop.permute.xlu0 %1557
      %1561 = vset.pattern.permute.xlu0 0
      %1562 = vperm.xlu0 %1561, %v1528
      %v1563 = vpop.permute.xlu0 %1562
      %1566 = vset.pattern.permute.xlu0 0
      %1567 = vperm.xlu0 %1566, %v1529
      %v1568 = vpop.permute.xlu0 %1567
      %1571 = vset.pattern.permute.xlu0 0
      %1572 = vperm.xlu0 %1571, %v1530
      %v1573 = vpop.permute.xlu0 %1572
      %1576 = vset.pattern.permute.xlu0 0
      %1577 = vperm.xlu0 %1576, %v1531
      %v1578 = vpop.permute.xlu0 %1577
      %1581 = vset.pattern.permute.xlu0 0
      %1582 = vperm.xlu0 %1581, %v1532
      %v1583 = vpop.permute.xlu0 %1582
      %1586 = vset.pattern.permute.xlu0 0
      %1587 = vperm.xlu0 %1586, %v1533
      %v1588 = vpop.permute.xlu0 %1587
      %1591 = vset.pattern.permute.xlu0 0
      %1592 = vperm.xlu0 %1591, %v1534
      %v1593 = vpop.permute.xlu0 %1592
      %1596 = vset.pattern.permute.xlu0 0
      %1597 = vperm.xlu0 %1596, %v1535
      %v1598 = vpop.permute.xlu0 %1597
      %1601 = vset.pattern.permute.xlu0 0
      %1602 = vperm.xlu0 %1601, %v1536
      %v1603 = vpop.permute.xlu0 %1602
      %1606 = vset.pattern.permute.xlu0 0
      %1607 = vperm.xlu0 %1606, %v1537
      %v1608 = vpop.permute.xlu0 %1607
      %v1610 = vmul.f32 %v1538, %v1553
      %v1611 = vmul.f32 %v1539, %v1558
      %v1612 = vmul.f32 %v1540, %v1563
      %v1613 = vmul.f32 %v1541, %v1568
      %v1614 = vmul.f32 %v1542, %v1573
      %v1615 = vmul.f32 %v1543, %v1578
      %v1616 = vmul.f32 %v1544, %v1583
      %v1617 = vmul.f32 %v1545, %v1588
      %v1618 = vmul.f32 %v1546, %v1593
      %v1619 = vmul.f32 %v1547, %v1598
      %v1620 = vmul.f32 %v1548, %v1603
      %v1621 = vmul.f32 %v1549, %v1608
      %1622 = vst.msk [vmem:[#allocation10] sm:$0xff] %vm116, %v1610
      %1623 = vst.msk [vmem:[#allocation10 + $0x8] sm:$0xff] %vm116, %v1611
      %1624 = vst.msk [vmem:[#allocation10 + $0x10] sm:$0xff] %vm116, %v1612
      %1625 = vst.msk [vmem:[#allocation10 + $0x18] sm:$0xff] %vm116, %v1613
      %1626 = vst.msk [vmem:[#allocation10 + $0x20] sm:$0xff] %vm116, %v1614
      %1627 = vst.msk [vmem:[#allocation10 + $0x28] sm:$0xff] %vm116, %v1615
      %1628 = vst.msk [vmem:[#allocation10 + $0x30] sm:$0xff] %vm116, %v1616
      %1629 = vst.msk [vmem:[#allocation10 + $0x38] sm:$0xff] %vm116, %v1617
      %1630 = vst.msk [vmem:[#allocation10 + $0x40] sm:$0xff] %vm116, %v1618
      %1631 = vst.msk [vmem:[#allocation10 + $0x48] sm:$0xff] %vm116, %v1619
      %1632 = vst.msk [vmem:[#allocation10 + $0x50] sm:$0xff] %vm116, %v1620
      %1633 = vst.msk [vmem:[#allocation10 + $0x58] sm:$0xff] %vm116, %v1621
    $region33: #{tpu_custom_call.1} parent=1 // pred_fallthru
      _
    // Predicated region
    $region34: #{tpu_custom_call.1} parent=1 // pred_check
      _
    $region35: #{tpu_custom_call.1} parent=1 // pred_check_branch
      %1635 = sbr.rel (0) target = $region37
    $region36: #{tpu_custom_call.1} parent=1 // pred_region
      %s1637 = ssub.s32 1536, 1536
      %1638 = vsyncadd [#allocation6], %s1637
      %s1639 = sshll.u32 [#allocation10], 4
      %s1640 = int_to_ptr.vmem [resolvable:$true] %s1639
      %1645 = dma.vmem_to_hbm [thread:$0]  %s1640, 1536, %s3, [#allocation6], 128, 128, 8
    $region37: #{tpu_custom_call.1} parent=1 // pred_fallthru
      _
    // Predicated region
    $region38: #{tpu_custom_call.1} parent=1 // pred_check
      _
    $region39: #{tpu_custom_call.1} parent=1 // pred_check_branch
      %1647 = sbr.rel (0) target = $region41
    $region40: #{tpu_custom_call.1} parent=1 // pred_region
      %1648 = dma.done [#allocation6], 1536
    $region41: #{tpu_custom_call.1} parent=1 // pred_fallthru
      _
    %1649 = vsyncpa [#allocation5], 1
    %1650 = vsyncpa [#allocation8], 1
    %1651 = vsyncpa [#allocation6], 1

</llo_original>
